<compile_context>
chip_gen: v5e
topology: v5e:2x2
jax: 0.10.0
libtpu: 0.0.40
codegen_flags: <defaults>
</compile_context>

<pallas_src>
import functools

import jax
import jax.numpy as jnp
from jax import lax
from jax.experimental import pallas as pl
from jax.experimental.pallas import tpu as pltpu


VMEM_SPEC = pl.BlockSpec(memory_space=pltpu.MemorySpace.VMEM)


# ----------------------------------------------------------------------------
# Fused kernel: encoder BiLSTM -> VAE head -> decoder LSTM -> output projection
# ----------------------------------------------------------------------------
def vae_fused_kernel(
        # activations
        x_enc_ref, x_dec_ref, eps_ref,
        # encoder weights (block-diag, per-gate direction-interleaved)
        w_enc_in_ref, whh_enc_ref, b_enc_ref,
        # VAE head (fc_mu | fc_logvar fused, lane-dense) + decoder init
        w_head_ref, b_head_ref, wdi_ref, bdi_ref,
        # decoder weights (W_ih split into embedding / latent parts)
        wembd_ref, wzd_ref, whhd_ref, b_d_ref,
        # output projection (V padded to a lane-dense multiple of 128)
        wout_ref, bout_ref,
        # outputs
        head_ref, logits_ref,
        # scratch
        hs_ref):
    f32 = jnp.float32
    Bp = eps_ref.shape[0]
    Z = eps_ref.shape[1]
    H = whhd_ref.shape[0]
    S_enc = x_enc_ref.shape[0] // Bp
    S_dec = x_dec_ref.shape[0] // Bp

    def lstm_gate_math(gates, c, hn, g_mask):
        # One full-width masked activation pass (tanh on the g segment,
        # sigmoid elsewhere); slice the activated tensor once per gate.
        act = jnp.where(g_mask, jnp.tanh(gates), jax.nn.sigmoid(gates))
        i = act[:, 0 * hn:1 * hn]
        f = act[:, 1 * hn:2 * hn]
        g = act[:, 2 * hn:3 * hn]
        o = act[:, 3 * hn:4 * hn]
        c_new = f * c + i * g
        h_new = o * jnp.tanh(c_new)
        return h_new, c_new

    # Hoisted lane masks (g-gate lanes) for the two gate widths.
    lane_enc = lax.broadcasted_iota(jnp.int32, (Bp, 8 * H), 1)
    g_mask_enc = (lane_enc >= 4 * H) & (lane_enc < 6 * H)
    lane_dec = lax.broadcasted_iota(jnp.int32, (Bp, 4 * H), 1)
    g_mask_dec = (lane_dec >= 2 * H) & (lane_dec < 3 * H)

    # ------------------------- encoder (bidirectional) -----------------------
    # Single fused input projection for both directions: x rows already pair
    # forward-time t with backward-time S-1-t; weight is block-diagonal over
    # direction with per-gate interleaved output columns.  Bias folded in.
    gin_enc = (jnp.dot(x_enc_ref[...], w_enc_in_ref[...],
                       preferred_element_type=f32)
               + b_enc_ref[...])                                      # (S*B, 8H)
    whh_enc = whh_enc_ref[...]                                        # (2H, 8H)

    h_cat = jnp.zeros((Bp, 2 * H), f32)                               # [h_f | h_b]
    c_cat = jnp.zeros((Bp, 2 * H), f32)                               # [c_f | c_b]
    for t in range(S_enc):                                            # unrolled
        gates = (gin_enc[t * Bp:(t + 1) * Bp, :]
                 + jnp.dot(h_cat, whh_enc, preferred_element_type=f32))
        h_cat, c_cat = lstm_gate_math(gates, c_cat, 2 * H, g_mask_enc)

    # ------------------------------- VAE head --------------------------------
    # hidden == h_cat == [h_fwd_final | h_bwd_final]; fused mu|logvar matmul.
    head = (jnp.dot(h_cat, w_head_ref[...], preferred_element_type=f32)
            + b_head_ref[...])                                        # (B, 128)
    head_ref[...] = head                                              # lane-dense out
    mu = head[:, :Z]
    logvar = head[:, Z:2 * Z]
    z = mu + eps_ref[...] * jnp.exp(0.5 * logvar)
    hid_init = (jnp.dot(z, wdi_ref[...], preferred_element_type=f32)
                + bdi_ref[...])                                       # (B, 2H)
    h = hid_init[:, :H]
    c = hid_init[:, H:]

    # -------------------------------- decoder --------------------------------
    # Hoisted input projection; time-invariant latent folded into b_eff.
    gin_dec = jnp.dot(x_dec_ref[...], wembd_ref[...],
                      preferred_element_type=f32)                     # (S*B, 4H)
    b_eff = (jnp.dot(z, wzd_ref[...], preferred_element_type=f32)
             + jnp.broadcast_to(b_d_ref[...], (Bp, 4 * H)))           # (B, 4H)
    whh_d = whhd_ref[...]                                             # (H, 4H)

    for t in range(S_dec):                                            # unrolled
        # (gin + b_eff) is independent of h -> overlaps the recurrent matmul.
        gates = ((gin_dec[t * Bp:(t + 1) * Bp, :] + b_eff)
                 + jnp.dot(h, whh_d, preferred_element_type=f32))
        h, c = lstm_gate_math(gates, c, H, g_mask_dec)
        hs_ref[t * Bp:(t + 1) * Bp, :] = h                            # VMEM scratch

    # Output projection batched over all timesteps, lane-dense (V_pad) output.
    logits_ref[...] = (jnp.dot(hs_ref[...], wout_ref[...],
                               preferred_element_type=f32) + bout_ref[...])


# ----------------------------------------------------------------------------
# One-time weight re-layout (hoisted out of the per-call wrapper)
# ----------------------------------------------------------------------------
def prepare_kernel_params(params):
    f32 = jnp.float32
    E = params["emb_enc"].shape[1]
    H = params["whh_f"].shape[1]
    Z = params["w_mu"].shape[0]
    V = params["w_out"].shape[0]
    V_pad = pl.cdiv(V, 128) * 128
    head_pad = max(128, pl.cdiv(2 * Z, 128) * 128)

    def interleave_gates(wf_t, wb_t):
        # wf_t/wb_t: (*, 4H) in PyTorch gate order i,f,g,o.
        # Output (*, 8H) with per-gate direction interleave
        # [i_f i_b f_f f_b g_f g_b o_f o_b].
        cols = []
        for k in range(4):
            cols.append(wf_t[:, k * H:(k + 1) * H])
            cols.append(wb_t[:, k * H:(k + 1) * H])
        return jnp.concatenate(cols, axis=1)

    # Encoder fused input projection: block-diag over direction, (2E, 8H).
    wih_f_t = params["wih_f"].T.astype(f32)                           # (E, 4H)
    wih_b_t = params["wih_b"].T.astype(f32)
    zeros_e = jnp.zeros((E, 4 * H), f32)
    w_enc_in = interleave_gates(
        jnp.concatenate([wih_f_t, zeros_e], axis=0),                  # fwd rows 0..E-1
        jnp.concatenate([zeros_e, wih_b_t], axis=0))                  # bwd rows E..2E-1

    # Encoder recurrent weight: block-diag over direction, (2H, 8H).
    whh_f_t = params["whh_f"].T.astype(f32)                           # (H, 4H)
    whh_b_t = params["whh_b"].T.astype(f32)
    zeros_h = jnp.zeros((H, 4 * H), f32)
    whh_enc = interleave_gates(
        jnp.concatenate([whh_f_t, zeros_h], axis=0),
        jnp.concatenate([zeros_h, whh_b_t], axis=0))

    b_enc = interleave_gates(params["b_f"], params["b_b"])            # (1, 8H)

    # Fused, lane-dense VAE head: columns [0,Z)=mu, [Z,2Z)=logvar, rest zero.
    w_head = jnp.zeros((2 * H, head_pad), f32)
    w_head = w_head.at[:, :Z].set(params["w_mu"].T)
    w_head = w_head.at[:, Z:2 * Z].set(params["w_lv"].T)
    b_head = jnp.zeros((1, head_pad), f32)
    b_head = b_head.at[:, :Z].set(params["b_mu"])
    b_head = b_head.at[:, Z:2 * Z].set(params["b_lv"])

    return dict(
        emb_enc=params["emb_enc"], emb_dec=params["emb_dec"],
        w_enc_in=w_enc_in, whh_enc=whh_enc, b_enc=b_enc,
        w_head=w_head, b_head=b_head,
        wdi=params["w_di"].T, bdi=params["b_di"],
        wembd=params["wih_d"][:, :E].T,                               # (E, 4H)
        wzd=params["wih_d"][:, E:].T,                                 # (Z, 4H)
        whhd=params["whh_d"].T,                                       # (H, 4H)
        b_d=params["b_d"],
        wout_pad=jnp.zeros((H, V_pad), f32).at[:, :V].set(params["w_out"].T),
        bout_pad=jnp.zeros((1, V_pad), f32).at[:, :V].set(params["b_out"]),
        V=int(V), Z=int(Z), H=int(H), E=int(E),
    )


# ----------------------------------------------------------------------------
# Wrapper: embedding lookups, batch padding, pallas_call plumbing
# ----------------------------------------------------------------------------
def vae_forward(prep, encoder_input, decoder_input, eps):
    f32 = jnp.float32
    B, S_enc = encoder_input.shape
    S_dec = decoder_input.shape[1]
    E, H, Z, V = prep["E"], prep["H"], prep["Z"], prep["V"]
    V_pad = prep["wout_pad"].shape[1]
    head_pad = prep["w_head"].shape[1]
    Bp = pl.cdiv(B, 8) * 8                                            # sublane pad

    # Embedding gathers (tiny tables; done in XLA) + batch pad to 8 sublanes.
    # TODO(synk): the gathers could be pulled in-kernel via an SMEM id table;
    # kept in the wrapper for lowering robustness.
    x_enc = jnp.take(prep["emb_enc"], encoder_input, axis=0)          # (B, S, E)
    x_dec = jnp.take(prep["emb_dec"], decoder_input, axis=0)          # (B, S, E)
    if Bp != B:
        pad = ((0, Bp - B), (0, 0), (0, 0))
        x_enc = jnp.pad(x_enc, pad)
        x_dec = jnp.pad(x_dec, pad)
        eps = jnp.pad(eps, ((0, Bp - B), (0, 0)))

    # Time-major flatten; encoder input paired with its time-reverse so one
    # block-diagonal matmul covers both directions.
    x_enc_tm = jnp.transpose(x_enc, (1, 0, 2))                        # (S, Bp, E)
    x_enc_fused = jnp.concatenate([x_enc_tm, x_enc_tm[::-1]],
                                  axis=2).reshape(S_enc * Bp, 2 * E)  # (S*Bp, 2E)
    x_dec_tm = jnp.transpose(x_dec, (1, 0, 2)).reshape(S_dec * Bp, E)

    head, logits_pad = pl.pallas_call(
        vae_fused_kernel,
        out_shape=(jax.ShapeDtypeStruct((Bp, head_pad), f32),
                   jax.ShapeDtypeStruct((S_dec * Bp, V_pad), f32)),
        in_specs=[VMEM_SPEC] * 16,
        out_specs=(VMEM_SPEC, VMEM_SPEC),
        scratch_shapes=[pltpu.VMEM((S_dec * Bp, H), f32)],
    )(x_enc_fused, x_dec_tm, eps,
      prep["w_enc_in"], prep["whh_enc"], prep["b_enc"],
      prep["w_head"], prep["b_head"], prep["wdi"], prep["bdi"],
      prep["wembd"], prep["wzd"], prep["whhd"], prep["b_d"],
      prep["wout_pad"], prep["bout_pad"])

    mu = head[:B, :Z]
    logvar = head[:B, Z:2 * Z]
    logits = logits_pad.reshape(S_dec, Bp, V_pad)[:, :B, :V]
    logits = jnp.transpose(logits, (1, 0, 2))                         # (B, S, V)
    return logits, mu, logvar


# ----------------------------------------------------------------------------
# Deterministic parameter init (PyTorch-style shapes / scaling)
# ----------------------------------------------------------------------------
def init_params(key, V, E, H, Z, pad_idx):
    ks = iter(jax.random.split(key, 32))
    f32 = jnp.float32

    def unif(shape, fan_in):
        bound = 1.0 / float(fan_in) ** 0.5
        return jax.random.uniform(next(ks), shape, f32, -bound, bound)

    emb_enc = jax.random.normal(next(ks), (V, E), f32).at[pad_idx].set(0.0)
    emb_dec = jax.random.normal(next(ks), (V, E), f32).at[pad_idx].set(0.0)

    def lstm_params(in_dim):
        w_ih = unif((4 * H, in_dim), H)
        w_hh = unif((4 * H, H), H)
        b = unif((1, 4 * H), H) + unif((1, 4 * H), H)   # b_ih + b_hh folded
        return w_ih, w_hh, b

    wih_f, whh_f, b_f = lstm_params(E)
    wih_b, whh_b, b_b = lstm_params(E)
    wih_d, whh_d, b_d = lstm_params(E + Z)

    return dict(
        emb_enc=emb_enc, emb_dec=emb_dec,
        wih_f=wih_f, whh_f=whh_f, b_f=b_f,
        wih_b=wih_b, whh_b=whh_b, b_b=b_b,
        w_mu=unif((Z, 2 * H), 2 * H), b_mu=unif((1, Z), 2 * H),
        w_lv=unif((Z, 2 * H), 2 * H), b_lv=unif((1, Z), 2 * H),
        w_di=unif((2 * H, Z), Z), b_di=unif((1, 2 * H), Z),
        wih_d=wih_d, whh_d=whh_d, b_d=b_d,
        w_out=unif((V, H), H), b_out=unif((1, V), H),
    )


# ----------------------------------------------------------------------------
# Independent pure-JAX reference (plain lax.scan LSTM, PyTorch weight layout)
# ----------------------------------------------------------------------------
def vae_forward_ref(params, encoder_input, decoder_input, eps):
    H = params["whh_f"].shape[1]

    def cell(carry, x_t, w_ih, w_hh, b):
        h, c = carry
        gates = x_t @ w_ih.T + h @ w_hh.T + b
        i, f, g, o = jnp.split(gates, 4, axis=1)
        c = jax.nn.sigmoid(f) * c + jax.nn.sigmoid(i) * jnp.tanh(g)
        h = jax.nn.sigmoid(o) * jnp.tanh(c)
        return (h, c), h

    def run_lstm(x_seq, w_ih, w_hh, b, h0, c0):
        def step(carry, x_t):
            return cell(carry, x_t, w_ih, w_hh, b)
        (h, c), hs = lax.scan(step, (h0, c0), x_seq)
        return h, hs

    B = encoder_input.shape[0]
    x = jnp.transpose(jnp.take(params["emb_enc"], encoder_input, axis=0), (1, 0, 2))
    z0 = jnp.zeros((B, H), jnp.float32)
    hf, _ = run_lstm(x, params["wih_f"], params["whh_f"], params["b_f"], z0, z0)
    hb, _ = run_lstm(x[::-1], params["wih_b"], params["whh_b"], params["b_b"], z0, z0)

    hidden = jnp.concatenate([hf, hb], axis=1)
    mu = hidden @ params["w_mu"].T + params["b_mu"]
    logvar = hidden @ params["w_lv"].T + params["b_lv"]
    z = mu + eps * jnp.exp(0.5 * logvar)
    hid_init = z @ params["w_di"].T + params["b_di"]
    h0, c0 = hid_init[:, :H], hid_init[:, H:]

    S_dec = decoder_input.shape[1]
    emb_d = jnp.take(params["emb_dec"], decoder_input, axis=0)
    dec_in = jnp.concatenate(
        [emb_d, jnp.broadcast_to(z[:, None, :], (B, S_dec, z.shape[1]))], axis=2)
    dec_in = jnp.transpose(dec_in, (1, 0, 2))
    _, hs = run_lstm(dec_in, params["wih_d"], params["whh_d"], params["b_d"], h0, c0)
    logits = jnp.einsum("sbh,vh->sbv", hs, params["w_out"]) + params["b_out"]
    return jnp.transpose(logits, (1, 0, 2)), mu, logvar


if __name__ == "__main__":
    VOCAB, EMB, HID, LAT = 50, 32, 32, 16
    SEQ, BATCH, PAD_IDX = 8, 2, 0

    key = jax.random.PRNGKey(0)
    k_param, k_enc, k_dec, k_eps = jax.random.split(key, 4)

    params = init_params(k_param, VOCAB, EMB, HID, LAT, PAD_IDX)
    prep = prepare_kernel_params(params)          # one-time weight re-layout

    encoder_input = jax.random.randint(k_enc, (BATCH, SEQ), 0, VOCAB, dtype=jnp.int32)
    decoder_input = jax.random.randint(k_dec, (BATCH, SEQ), 0, VOCAB, dtype=jnp.int32)
    # TODO(synk): torch.randn_like RNG cannot be matched bit-for-bit; eps is
    # drawn once with jax.random and fed to the kernel explicitly.
    eps = jax.random.normal(k_eps, (BATCH, LAT), jnp.float32)

    fwd = jax.jit(functools.partial(vae_forward, prep))
    logits, mu, logvar = fwd(encoder_input, decoder_input, eps)
    jax.block_until_ready((logits, mu, logvar))

    assert logits.shape == (BATCH, SEQ, VOCAB)
    assert mu.shape == (BATCH, LAT) and logvar.shape == (BATCH, LAT)

    ref_logits, ref_mu, ref_logvar = vae_forward_ref(
        params, encoder_input, decoder_input, eps)
    assert jnp.allclose(logits, ref_logits, rtol=1e-3, atol=1e-3)
    assert jnp.allclose(mu, ref_mu, rtol=1e-3, atol=1e-3)
    assert jnp.allclose(logvar, ref_logvar, rtol=1e-3, atol=1e-3)

    print("KERNEL_OK")
</pallas_src>

<mosaic_0001>
module attributes {stable_mosaic.version = 11 : i64} {
  func.func @vae_fused_kernel(%arg0: memref<64x64xf32, #tpu.memory_space<vmem>>, %arg1: memref<64x32xf32, #tpu.memory_space<vmem>>, %arg2: memref<8x16xf32, #tpu.memory_space<vmem>>, %arg3: memref<64x256xf32, #tpu.memory_space<vmem>>, %arg4: memref<64x256xf32, #tpu.memory_space<vmem>>, %arg5: memref<1x256xf32, #tpu.memory_space<vmem>>, %arg6: memref<64x128xf32, #tpu.memory_space<vmem>>, %arg7: memref<1x128xf32, #tpu.memory_space<vmem>>, %arg8: memref<16x64xf32, #tpu.memory_space<vmem>>, %arg9: memref<1x64xf32, #tpu.memory_space<vmem>>, %arg10: memref<32x128xf32, #tpu.memory_space<vmem>>, %arg11: memref<16x128xf32, #tpu.memory_space<vmem>>, %arg12: memref<32x128xf32, #tpu.memory_space<vmem>>, %arg13: memref<1x128xf32, #tpu.memory_space<vmem>>, %arg14: memref<32x128xf32, #tpu.memory_space<vmem>>, %arg15: memref<1x128xf32, #tpu.memory_space<vmem>>, %arg16: memref<8x128xf32, #tpu.memory_space<vmem>>, %arg17: memref<64x128xf32, #tpu.memory_space<vmem>>, %arg18: memref<64x32xf32, #tpu.memory_space<vmem>>) attributes {dimension_semantics = [], scalar_prefetch = 0 : i64, scratch_operands = 1 : i64, tpu.core_type = #tpu.core_type<tc>} {
    %0 = tpu.iota {dimensions = array<i32: 1>} : vector<8x256xi32>
    %c128_i32 = arith.constant 128 : i32
    %1 = vector.broadcast %c128_i32 : i32 to vector<8x256xi32>
    %2 = arith.cmpi sge, %0, %1 : vector<8x256xi32>
    %c192_i32 = arith.constant 192 : i32
    %3 = vector.broadcast %c192_i32 : i32 to vector<8x256xi32>
    %4 = arith.cmpi slt, %0, %3 : vector<8x256xi32>
    %5 = arith.andi %2, %4 : vector<8x256xi1>
    %6 = tpu.iota {dimensions = array<i32: 1>} : vector<8x128xi32>
    %c64_i32 = arith.constant 64 : i32
    %7 = vector.broadcast %c64_i32 : i32 to vector<8x128xi32>
    %8 = arith.cmpi sge, %6, %7 : vector<8x128xi32>
    %c96_i32 = arith.constant 96 : i32
    %9 = vector.broadcast %c96_i32 : i32 to vector<8x128xi32>
    %10 = arith.cmpi slt, %6, %9 : vector<8x128xi32>
    %11 = arith.andi %8, %10 : vector<8x128xi1>
    %c0 = arith.constant 0 : index
    %c0_0 = arith.constant 0 : index
    %12 = vector.load %arg0[%c0, %c0_0] : memref<64x64xf32, #tpu.memory_space<vmem>>, vector<64x64xf32>
    %c0_1 = arith.constant 0 : index
    %c0_2 = arith.constant 0 : index
    %13 = vector.load %arg3[%c0_1, %c0_2] : memref<64x256xf32, #tpu.memory_space<vmem>>, vector<64x256xf32>
    %cst = arith.constant dense<0.000000e+00> : vector<64x256xf32>
    %14 = tpu.matmul %12, %13, %cst {dimension_numbers = #tpu.dot_dimension_numbers<[1], [0], [0], [1], [0, 0, 1, 1], [], []>} : vector<64x64xf32>, vector<64x256xf32>, vector<64x256xf32> -> vector<64x256xf32>
    %c0_3 = arith.constant 0 : index
    %c0_4 = arith.constant 0 : index
    %15 = vector.load %arg5[%c0_3, %c0_4] : memref<1x256xf32, #tpu.memory_space<vmem>>, vector<1x256xf32>
    %16 = vector.broadcast %15 : vector<1x256xf32> to vector<64x256xf32>
    %17 = arith.addf %14, %16 : vector<64x256xf32>
    %c0_5 = arith.constant 0 : index
    %c0_6 = arith.constant 0 : index
    %18 = vector.load %arg4[%c0_5, %c0_6] : memref<64x256xf32, #tpu.memory_space<vmem>>, vector<64x256xf32>
    %cst_7 = arith.constant 0.000000e+00 : f32
    %19 = vector.broadcast %cst_7 : f32 to vector<8x64xf32>
    %cst_8 = arith.constant 0.000000e+00 : f32
    %20 = vector.broadcast %cst_8 : f32 to vector<8x64xf32>
    %21 = vector.extract_strided_slice %17 {offsets = [0, 0], sizes = [8, 256], strides = [1, 1]} : vector<64x256xf32> to vector<8x256xf32>
    %cst_9 = arith.constant dense<0.000000e+00> : vector<8x256xf32>
    %22 = tpu.matmul %19, %18, %cst_9 {dimension_numbers = #tpu.dot_dimension_numbers<[1], [0], [0], [1], [0, 0, 1, 1], [], []>} : vector<8x64xf32>, vector<64x256xf32>, vector<8x256xf32> -> vector<8x256xf32>
    %23 = arith.addf %21, %22 : vector<8x256xf32>
    %24 = math.tanh %23 : vector<8x256xf32>
    %25 = arith.negf %23 : vector<8x256xf32>
    %26 = math.exp %25 : vector<8x256xf32>
    %cst_10 = arith.constant 1.000000e+00 : f32
    %27 = vector.broadcast %cst_10 : f32 to vector<8x256xf32>
    %28 = arith.addf %27, %26 : vector<8x256xf32>
    %29 = arith.divf %27, %28 : vector<8x256xf32>
    %30 = arith.select %5, %24, %29 : vector<8x256xi1>, vector<8x256xf32>
    %31 = vector.extract_strided_slice %30 {offsets = [0, 0], sizes = [8, 64], strides = [1, 1]} : vector<8x256xf32> to vector<8x64xf32>
    %32 = vector.extract_strided_slice %30 {offsets = [0, 64], sizes = [8, 64], strides = [1, 1]} : vector<8x256xf32> to vector<8x64xf32>
    %33 = vector.extract_strided_slice %30 {offsets = [0, 128], sizes = [8, 64], strides = [1, 1]} : vector<8x256xf32> to vector<8x64xf32>
    %34 = vector.extract_strided_slice %30 {offsets = [0, 192], sizes = [8, 64], strides = [1, 1]} : vector<8x256xf32> to vector<8x64xf32>
    %35 = arith.mulf %32, %20 : vector<8x64xf32>
    %36 = arith.mulf %31, %33 : vector<8x64xf32>
    %37 = arith.addf %35, %36 : vector<8x64xf32>
    %38 = math.tanh %37 : vector<8x64xf32>
    %39 = arith.mulf %34, %38 : vector<8x64xf32>
    %40 = vector.extract_strided_slice %17 {offsets = [8, 0], sizes = [8, 256], strides = [1, 1]} : vector<64x256xf32> to vector<8x256xf32>
    %cst_11 = arith.constant dense<0.000000e+00> : vector<8x256xf32>
    %41 = tpu.matmul %39, %18, %cst_11 {dimension_numbers = #tpu.dot_dimension_numbers<[1], [0], [0], [1], [0, 0, 1, 1], [], []>} : vector<8x64xf32>, vector<64x256xf32>, vector<8x256xf32> -> vector<8x256xf32>
    %42 = arith.addf %40, %41 : vector<8x256xf32>
    %43 = math.tanh %42 : vector<8x256xf32>
    %44 = arith.negf %42 : vector<8x256xf32>
    %45 = math.exp %44 : vector<8x256xf32>
    %cst_12 = arith.constant 1.000000e+00 : f32
    %46 = vector.broadcast %cst_12 : f32 to vector<8x256xf32>
    %47 = arith.addf %46, %45 : vector<8x256xf32>
    %48 = arith.divf %46, %47 : vector<8x256xf32>
    %49 = arith.select %5, %43, %48 : vector<8x256xi1>, vector<8x256xf32>
    %50 = vector.extract_strided_slice %49 {offsets = [0, 0], sizes = [8, 64], strides = [1, 1]} : vector<8x256xf32> to vector<8x64xf32>
    %51 = vector.extract_strided_slice %49 {offsets = [0, 64], sizes = [8, 64], strides = [1, 1]} : vector<8x256xf32> to vector<8x64xf32>
    %52 = vector.extract_strided_slice %49 {offsets = [0, 128], sizes = [8, 64], strides = [1, 1]} : vector<8x256xf32> to vector<8x64xf32>
    %53 = vector.extract_strided_slice %49 {offsets = [0, 192], sizes = [8, 64], strides = [1, 1]} : vector<8x256xf32> to vector<8x64xf32>
    %54 = arith.mulf %51, %37 : vector<8x64xf32>
    %55 = arith.mulf %50, %52 : vector<8x64xf32>
    %56 = arith.addf %54, %55 : vector<8x64xf32>
    %57 = math.tanh %56 : vector<8x64xf32>
    %58 = arith.mulf %53, %57 : vector<8x64xf32>
    %59 = vector.extract_strided_slice %17 {offsets = [16, 0], sizes = [8, 256], strides = [1, 1]} : vector<64x256xf32> to vector<8x256xf32>
    %cst_13 = arith.constant dense<0.000000e+00> : vector<8x256xf32>
    %60 = tpu.matmul %58, %18, %cst_13 {dimension_numbers = #tpu.dot_dimension_numbers<[1], [0], [0], [1], [0, 0, 1, 1], [], []>} : vector<8x64xf32>, vector<64x256xf32>, vector<8x256xf32> -> vector<8x256xf32>
    %61 = arith.addf %59, %60 : vector<8x256xf32>
    %62 = math.tanh %61 : vector<8x256xf32>
    %63 = arith.negf %61 : vector<8x256xf32>
    %64 = math.exp %63 : vector<8x256xf32>
    %cst_14 = arith.constant 1.000000e+00 : f32
    %65 = vector.broadcast %cst_14 : f32 to vector<8x256xf32>
    %66 = arith.addf %65, %64 : vector<8x256xf32>
    %67 = arith.divf %65, %66 : vector<8x256xf32>
    %68 = arith.select %5, %62, %67 : vector<8x256xi1>, vector<8x256xf32>
    %69 = vector.extract_strided_slice %68 {offsets = [0, 0], sizes = [8, 64], strides = [1, 1]} : vector<8x256xf32> to vector<8x64xf32>
    %70 = vector.extract_strided_slice %68 {offsets = [0, 64], sizes = [8, 64], strides = [1, 1]} : vector<8x256xf32> to vector<8x64xf32>
    %71 = vector.extract_strided_slice %68 {offsets = [0, 128], sizes = [8, 64], strides = [1, 1]} : vector<8x256xf32> to vector<8x64xf32>
    %72 = vector.extract_strided_slice %68 {offsets = [0, 192], sizes = [8, 64], strides = [1, 1]} : vector<8x256xf32> to vector<8x64xf32>
    %73 = arith.mulf %70, %56 : vector<8x64xf32>
    %74 = arith.mulf %69, %71 : vector<8x64xf32>
    %75 = arith.addf %73, %74 : vector<8x64xf32>
    %76 = math.tanh %75 : vector<8x64xf32>
    %77 = arith.mulf %72, %76 : vector<8x64xf32>
    %78 = vector.extract_strided_slice %17 {offsets = [24, 0], sizes = [8, 256], strides = [1, 1]} : vector<64x256xf32> to vector<8x256xf32>
    %cst_15 = arith.constant dense<0.000000e+00> : vector<8x256xf32>
    %79 = tpu.matmul %77, %18, %cst_15 {dimension_numbers = #tpu.dot_dimension_numbers<[1], [0], [0], [1], [0, 0, 1, 1], [], []>} : vector<8x64xf32>, vector<64x256xf32>, vector<8x256xf32> -> vector<8x256xf32>
    %80 = arith.addf %78, %79 : vector<8x256xf32>
    %81 = math.tanh %80 : vector<8x256xf32>
    %82 = arith.negf %80 : vector<8x256xf32>
    %83 = math.exp %82 : vector<8x256xf32>
    %cst_16 = arith.constant 1.000000e+00 : f32
    %84 = vector.broadcast %cst_16 : f32 to vector<8x256xf32>
    %85 = arith.addf %84, %83 : vector<8x256xf32>
    %86 = arith.divf %84, %85 : vector<8x256xf32>
    %87 = arith.select %5, %81, %86 : vector<8x256xi1>, vector<8x256xf32>
    %88 = vector.extract_strided_slice %87 {offsets = [0, 0], sizes = [8, 64], strides = [1, 1]} : vector<8x256xf32> to vector<8x64xf32>
    %89 = vector.extract_strided_slice %87 {offsets = [0, 64], sizes = [8, 64], strides = [1, 1]} : vector<8x256xf32> to vector<8x64xf32>
    %90 = vector.extract_strided_slice %87 {offsets = [0, 128], sizes = [8, 64], strides = [1, 1]} : vector<8x256xf32> to vector<8x64xf32>
    %91 = vector.extract_strided_slice %87 {offsets = [0, 192], sizes = [8, 64], strides = [1, 1]} : vector<8x256xf32> to vector<8x64xf32>
    %92 = arith.mulf %89, %75 : vector<8x64xf32>
    %93 = arith.mulf %88, %90 : vector<8x64xf32>
    %94 = arith.addf %92, %93 : vector<8x64xf32>
    %95 = math.tanh %94 : vector<8x64xf32>
    %96 = arith.mulf %91, %95 : vector<8x64xf32>
    %97 = vector.extract_strided_slice %17 {offsets = [32, 0], sizes = [8, 256], strides = [1, 1]} : vector<64x256xf32> to vector<8x256xf32>
    %cst_17 = arith.constant dense<0.000000e+00> : vector<8x256xf32>
    %98 = tpu.matmul %96, %18, %cst_17 {dimension_numbers = #tpu.dot_dimension_numbers<[1], [0], [0], [1], [0, 0, 1, 1], [], []>} : vector<8x64xf32>, vector<64x256xf32>, vector<8x256xf32> -> vector<8x256xf32>
    %99 = arith.addf %97, %98 : vector<8x256xf32>
    %100 = math.tanh %99 : vector<8x256xf32>
    %101 = arith.negf %99 : vector<8x256xf32>
    %102 = math.exp %101 : vector<8x256xf32>
    %cst_18 = arith.constant 1.000000e+00 : f32
    %103 = vector.broadcast %cst_18 : f32 to vector<8x256xf32>
    %104 = arith.addf %103, %102 : vector<8x256xf32>
    %105 = arith.divf %103, %104 : vector<8x256xf32>
    %106 = arith.select %5, %100, %105 : vector<8x256xi1>, vector<8x256xf32>
    %107 = vector.extract_strided_slice %106 {offsets = [0, 0], sizes = [8, 64], strides = [1, 1]} : vector<8x256xf32> to vector<8x64xf32>
    %108 = vector.extract_strided_slice %106 {offsets = [0, 64], sizes = [8, 64], strides = [1, 1]} : vector<8x256xf32> to vector<8x64xf32>
    %109 = vector.extract_strided_slice %106 {offsets = [0, 128], sizes = [8, 64], strides = [1, 1]} : vector<8x256xf32> to vector<8x64xf32>
    %110 = vector.extract_strided_slice %106 {offsets = [0, 192], sizes = [8, 64], strides = [1, 1]} : vector<8x256xf32> to vector<8x64xf32>
    %111 = arith.mulf %108, %94 : vector<8x64xf32>
    %112 = arith.mulf %107, %109 : vector<8x64xf32>
    %113 = arith.addf %111, %112 : vector<8x64xf32>
    %114 = math.tanh %113 : vector<8x64xf32>
    %115 = arith.mulf %110, %114 : vector<8x64xf32>
    %116 = vector.extract_strided_slice %17 {offsets = [40, 0], sizes = [8, 256], strides = [1, 1]} : vector<64x256xf32> to vector<8x256xf32>
    %cst_19 = arith.constant dense<0.000000e+00> : vector<8x256xf32>
    %117 = tpu.matmul %115, %18, %cst_19 {dimension_numbers = #tpu.dot_dimension_numbers<[1], [0], [0], [1], [0, 0, 1, 1], [], []>} : vector<8x64xf32>, vector<64x256xf32>, vector<8x256xf32> -> vector<8x256xf32>
    %118 = arith.addf %116, %117 : vector<8x256xf32>
    %119 = math.tanh %118 : vector<8x256xf32>
    %120 = arith.negf %118 : vector<8x256xf32>
    %121 = math.exp %120 : vector<8x256xf32>
    %cst_20 = arith.constant 1.000000e+00 : f32
    %122 = vector.broadcast %cst_20 : f32 to vector<8x256xf32>
    %123 = arith.addf %122, %121 : vector<8x256xf32>
    %124 = arith.divf %122, %123 : vector<8x256xf32>
    %125 = arith.select %5, %119, %124 : vector<8x256xi1>, vector<8x256xf32>
    %126 = vector.extract_strided_slice %125 {offsets = [0, 0], sizes = [8, 64], strides = [1, 1]} : vector<8x256xf32> to vector<8x64xf32>
    %127 = vector.extract_strided_slice %125 {offsets = [0, 64], sizes = [8, 64], strides = [1, 1]} : vector<8x256xf32> to vector<8x64xf32>
    %128 = vector.extract_strided_slice %125 {offsets = [0, 128], sizes = [8, 64], strides = [1, 1]} : vector<8x256xf32> to vector<8x64xf32>
    %129 = vector.extract_strided_slice %125 {offsets = [0, 192], sizes = [8, 64], strides = [1, 1]} : vector<8x256xf32> to vector<8x64xf32>
    %130 = arith.mulf %127, %113 : vector<8x64xf32>
    %131 = arith.mulf %126, %128 : vector<8x64xf32>
    %132 = arith.addf %130, %131 : vector<8x64xf32>
    %133 = math.tanh %132 : vector<8x64xf32>
    %134 = arith.mulf %129, %133 : vector<8x64xf32>
    %135 = vector.extract_strided_slice %17 {offsets = [48, 0], sizes = [8, 256], strides = [1, 1]} : vector<64x256xf32> to vector<8x256xf32>
    %cst_21 = arith.constant dense<0.000000e+00> : vector<8x256xf32>
    %136 = tpu.matmul %134, %18, %cst_21 {dimension_numbers = #tpu.dot_dimension_numbers<[1], [0], [0], [1], [0, 0, 1, 1], [], []>} : vector<8x64xf32>, vector<64x256xf32>, vector<8x256xf32> -> vector<8x256xf32>
    %137 = arith.addf %135, %136 : vector<8x256xf32>
    %138 = math.tanh %137 : vector<8x256xf32>
    %139 = arith.negf %137 : vector<8x256xf32>
    %140 = math.exp %139 : vector<8x256xf32>
    %cst_22 = arith.constant 1.000000e+00 : f32
    %141 = vector.broadcast %cst_22 : f32 to vector<8x256xf32>
    %142 = arith.addf %141, %140 : vector<8x256xf32>
    %143 = arith.divf %141, %142 : vector<8x256xf32>
    %144 = arith.select %5, %138, %143 : vector<8x256xi1>, vector<8x256xf32>
    %145 = vector.extract_strided_slice %144 {offsets = [0, 0], sizes = [8, 64], strides = [1, 1]} : vector<8x256xf32> to vector<8x64xf32>
    %146 = vector.extract_strided_slice %144 {offsets = [0, 64], sizes = [8, 64], strides = [1, 1]} : vector<8x256xf32> to vector<8x64xf32>
    %147 = vector.extract_strided_slice %144 {offsets = [0, 128], sizes = [8, 64], strides = [1, 1]} : vector<8x256xf32> to vector<8x64xf32>
    %148 = vector.extract_strided_slice %144 {offsets = [0, 192], sizes = [8, 64], strides = [1, 1]} : vector<8x256xf32> to vector<8x64xf32>
    %149 = arith.mulf %146, %132 : vector<8x64xf32>
    %150 = arith.mulf %145, %147 : vector<8x64xf32>
    %151 = arith.addf %149, %150 : vector<8x64xf32>
    %152 = math.tanh %151 : vector<8x64xf32>
    %153 = arith.mulf %148, %152 : vector<8x64xf32>
    %154 = vector.extract_strided_slice %17 {offsets = [56, 0], sizes = [8, 256], strides = [1, 1]} : vector<64x256xf32> to vector<8x256xf32>
    %cst_23 = arith.constant dense<0.000000e+00> : vector<8x256xf32>
    %155 = tpu.matmul %153, %18, %cst_23 {dimension_numbers = #tpu.dot_dimension_numbers<[1], [0], [0], [1], [0, 0, 1, 1], [], []>} : vector<8x64xf32>, vector<64x256xf32>, vector<8x256xf32> -> vector<8x256xf32>
    %156 = arith.addf %154, %155 : vector<8x256xf32>
    %157 = math.tanh %156 : vector<8x256xf32>
    %158 = arith.negf %156 : vector<8x256xf32>
    %159 = math.exp %158 : vector<8x256xf32>
    %cst_24 = arith.constant 1.000000e+00 : f32
    %160 = vector.broadcast %cst_24 : f32 to vector<8x256xf32>
    %161 = arith.addf %160, %159 : vector<8x256xf32>
    %162 = arith.divf %160, %161 : vector<8x256xf32>
    %163 = arith.select %5, %157, %162 : vector<8x256xi1>, vector<8x256xf32>
    %164 = vector.extract_strided_slice %163 {offsets = [0, 0], sizes = [8, 64], strides = [1, 1]} : vector<8x256xf32> to vector<8x64xf32>
    %165 = vector.extract_strided_slice %163 {offsets = [0, 64], sizes = [8, 64], strides = [1, 1]} : vector<8x256xf32> to vector<8x64xf32>
    %166 = vector.extract_strided_slice %163 {offsets = [0, 128], sizes = [8, 64], strides = [1, 1]} : vector<8x256xf32> to vector<8x64xf32>
    %167 = vector.extract_strided_slice %163 {offsets = [0, 192], sizes = [8, 64], strides = [1, 1]} : vector<8x256xf32> to vector<8x64xf32>
    %168 = arith.mulf %165, %151 : vector<8x64xf32>
    %169 = arith.mulf %164, %166 : vector<8x64xf32>
    %170 = arith.addf %168, %169 : vector<8x64xf32>
    %171 = math.tanh %170 : vector<8x64xf32>
    %172 = arith.mulf %167, %171 : vector<8x64xf32>
    %c0_25 = arith.constant 0 : index
    %c0_26 = arith.constant 0 : index
    %173 = vector.load %arg6[%c0_25, %c0_26] : memref<64x128xf32, #tpu.memory_space<vmem>>, vector<64x128xf32>
    %cst_27 = arith.constant dense<0.000000e+00> : vector<8x128xf32>
    %174 = tpu.matmul %172, %173, %cst_27 {dimension_numbers = #tpu.dot_dimension_numbers<[1], [0], [0], [1], [0, 0, 1, 1], [], []>} : vector<8x64xf32>, vector<64x128xf32>, vector<8x128xf32> -> vector<8x128xf32>
    %c0_28 = arith.constant 0 : index
    %c0_29 = arith.constant 0 : index
    %175 = vector.load %arg7[%c0_28, %c0_29] : memref<1x128xf32, #tpu.memory_space<vmem>>, vector<1x128xf32>
    %176 = vector.broadcast %175 : vector<1x128xf32> to vector<8x128xf32>
    %177 = arith.addf %174, %176 : vector<8x128xf32>
    %c0_30 = arith.constant 0 : index
    %c0_31 = arith.constant 0 : index
    %178 = vector.load %arg16[%c0_30, %c0_31] : memref<8x128xf32, #tpu.memory_space<vmem>>, vector<8x128xf32>
    tpu.vector_store %arg16[%c0_30, %c0_31], %177 {strides = array<i32>} : memref<8x128xf32, #tpu.memory_space<vmem>>, vector<8x128xf32>,
    %179 = vector.extract_strided_slice %177 {offsets = [0, 0], sizes = [8, 16], strides = [1, 1]} : vector<8x128xf32> to vector<8x16xf32>
    %180 = vector.extract_strided_slice %177 {offsets = [0, 16], sizes = [8, 16], strides = [1, 1]} : vector<8x128xf32> to vector<8x16xf32>
    %c0_32 = arith.constant 0 : index
    %c0_33 = arith.constant 0 : index
    %181 = vector.load %arg2[%c0_32, %c0_33] : memref<8x16xf32, #tpu.memory_space<vmem>>, vector<8x16xf32>
    %cst_34 = arith.constant 5.000000e-01 : f32
    %182 = vector.broadcast %cst_34 : f32 to vector<8x16xf32>
    %183 = arith.mulf %182, %180 : vector<8x16xf32>
    %184 = math.exp %183 : vector<8x16xf32>
    %185 = arith.mulf %181, %184 : vector<8x16xf32>
    %186 = arith.addf %179, %185 : vector<8x16xf32>
    %c0_35 = arith.constant 0 : index
    %c0_36 = arith.constant 0 : index
    %187 = vector.load %arg8[%c0_35, %c0_36] : memref<16x64xf32, #tpu.memory_space<vmem>>, vector<16x64xf32>
    %cst_37 = arith.constant dense<0.000000e+00> : vector<8x64xf32>
    %188 = tpu.matmul %186, %187, %cst_37 {dimension_numbers = #tpu.dot_dimension_numbers<[1], [0], [0], [1], [0, 0, 1, 1], [], []>} : vector<8x16xf32>, vector<16x64xf32>, vector<8x64xf32> -> vector<8x64xf32>
    %c0_38 = arith.constant 0 : index
    %c0_39 = arith.constant 0 : index
    %189 = vector.load %arg9[%c0_38, %c0_39] : memref<1x64xf32, #tpu.memory_space<vmem>>, vector<1x64xf32>
    %190 = vector.broadcast %189 : vector<1x64xf32> to vector<8x64xf32>
    %191 = arith.addf %188, %190 : vector<8x64xf32>
    %192 = vector.extract_strided_slice %191 {offsets = [0, 0], sizes = [8, 32], strides = [1, 1]} : vector<8x64xf32> to vector<8x32xf32>
    %193 = vector.extract_strided_slice %191 {offsets = [0, 32], sizes = [8, 32], strides = [1, 1]} : vector<8x64xf32> to vector<8x32xf32>
    %c0_40 = arith.constant 0 : index
    %c0_41 = arith.constant 0 : index
    %194 = vector.load %arg1[%c0_40, %c0_41] : memref<64x32xf32, #tpu.memory_space<vmem>>, vector<64x32xf32>
    %c0_42 = arith.constant 0 : index
    %c0_43 = arith.constant 0 : index
    %195 = vector.load %arg10[%c0_42, %c0_43] : memref<32x128xf32, #tpu.memory_space<vmem>>, vector<32x128xf32>
    %cst_44 = arith.constant dense<0.000000e+00> : vector<64x128xf32>
    %196 = tpu.matmul %194, %195, %cst_44 {dimension_numbers = #tpu.dot_dimension_numbers<[1], [0], [0], [1], [0, 0, 1, 1], [], []>} : vector<64x32xf32>, vector<32x128xf32>, vector<64x128xf32> -> vector<64x128xf32>
    %c0_45 = arith.constant 0 : index
    %c0_46 = arith.constant 0 : index
    %197 = vector.load %arg11[%c0_45, %c0_46] : memref<16x128xf32, #tpu.memory_space<vmem>>, vector<16x128xf32>
    %cst_47 = arith.constant dense<0.000000e+00> : vector<8x128xf32>
    %198 = tpu.matmul %186, %197, %cst_47 {dimension_numbers = #tpu.dot_dimension_numbers<[1], [0], [0], [1], [0, 0, 1, 1], [], []>} : vector<8x16xf32>, vector<16x128xf32>, vector<8x128xf32> -> vector<8x128xf32>
    %c0_48 = arith.constant 0 : index
    %c0_49 = arith.constant 0 : index
    %199 = vector.load %arg13[%c0_48, %c0_49] : memref<1x128xf32, #tpu.memory_space<vmem>>, vector<1x128xf32>
    %200 = vector.shape_cast %199 : vector<1x128xf32> to vector<1x128xf32>
    %201 = vector.broadcast %200 : vector<1x128xf32> to vector<8x128xf32>
    %202 = arith.addf %198, %201 : vector<8x128xf32>
    %c0_50 = arith.constant 0 : index
    %c0_51 = arith.constant 0 : index
    %203 = vector.load %arg12[%c0_50, %c0_51] : memref<32x128xf32, #tpu.memory_space<vmem>>, vector<32x128xf32>
    %204 = vector.extract_strided_slice %196 {offsets = [0, 0], sizes = [8, 128], strides = [1, 1]} : vector<64x128xf32> to vector<8x128xf32>
    %205 = arith.addf %204, %202 : vector<8x128xf32>
    %cst_52 = arith.constant dense<0.000000e+00> : vector<8x128xf32>
    %206 = tpu.matmul %192, %203, %cst_52 {dimension_numbers = #tpu.dot_dimension_numbers<[1], [0], [0], [1], [0, 0, 1, 1], [], []>} : vector<8x32xf32>, vector<32x128xf32>, vector<8x128xf32> -> vector<8x128xf32>
    %207 = arith.addf %205, %206 : vector<8x128xf32>
    %208 = math.tanh %207 : vector<8x128xf32>
    %209 = arith.negf %207 : vector<8x128xf32>
    %210 = math.exp %209 : vector<8x128xf32>
    %cst_53 = arith.constant 1.000000e+00 : f32
    %211 = vector.broadcast %cst_53 : f32 to vector<8x128xf32>
    %212 = arith.addf %211, %210 : vector<8x128xf32>
    %213 = arith.divf %211, %212 : vector<8x128xf32>
    %214 = arith.select %11, %208, %213 : vector<8x128xi1>, vector<8x128xf32>
    %215 = vector.extract_strided_slice %214 {offsets = [0, 0], sizes = [8, 32], strides = [1, 1]} : vector<8x128xf32> to vector<8x32xf32>
    %216 = vector.extract_strided_slice %214 {offsets = [0, 32], sizes = [8, 32], strides = [1, 1]} : vector<8x128xf32> to vector<8x32xf32>
    %217 = vector.extract_strided_slice %214 {offsets = [0, 64], sizes = [8, 32], strides = [1, 1]} : vector<8x128xf32> to vector<8x32xf32>
    %218 = vector.extract_strided_slice %214 {offsets = [0, 96], sizes = [8, 32], strides = [1, 1]} : vector<8x128xf32> to vector<8x32xf32>
    %219 = arith.mulf %216, %193 : vector<8x32xf32>
    %220 = arith.mulf %215, %217 : vector<8x32xf32>
    %221 = arith.addf %219, %220 : vector<8x32xf32>
    %222 = math.tanh %221 : vector<8x32xf32>
    %223 = arith.mulf %218, %222 : vector<8x32xf32>
    %c0_54 = arith.constant 0 : index
    %c0_55 = arith.constant 0 : index
    %224 = vector.load %arg18[%c0_54, %c0_55] : memref<64x32xf32, #tpu.memory_space<vmem>>, vector<8x32xf32>
    tpu.vector_store %arg18[%c0_54, %c0_55], %223 {strides = array<i32>} : memref<64x32xf32, #tpu.memory_space<vmem>>, vector<8x32xf32>,
    %225 = vector.extract_strided_slice %196 {offsets = [8, 0], sizes = [8, 128], strides = [1, 1]} : vector<64x128xf32> to vector<8x128xf32>
    %226 = arith.addf %225, %202 : vector<8x128xf32>
    %cst_56 = arith.constant dense<0.000000e+00> : vector<8x128xf32>
    %227 = tpu.matmul %223, %203, %cst_56 {dimension_numbers = #tpu.dot_dimension_numbers<[1], [0], [0], [1], [0, 0, 1, 1], [], []>} : vector<8x32xf32>, vector<32x128xf32>, vector<8x128xf32> -> vector<8x128xf32>
    %228 = arith.addf %226, %227 : vector<8x128xf32>
    %229 = math.tanh %228 : vector<8x128xf32>
    %230 = arith.negf %228 : vector<8x128xf32>
    %231 = math.exp %230 : vector<8x128xf32>
    %cst_57 = arith.constant 1.000000e+00 : f32
    %232 = vector.broadcast %cst_57 : f32 to vector<8x128xf32>
    %233 = arith.addf %232, %231 : vector<8x128xf32>
    %234 = arith.divf %232, %233 : vector<8x128xf32>
    %235 = arith.select %11, %229, %234 : vector<8x128xi1>, vector<8x128xf32>
    %236 = vector.extract_strided_slice %235 {offsets = [0, 0], sizes = [8, 32], strides = [1, 1]} : vector<8x128xf32> to vector<8x32xf32>
    %237 = vector.extract_strided_slice %235 {offsets = [0, 32], sizes = [8, 32], strides = [1, 1]} : vector<8x128xf32> to vector<8x32xf32>
    %238 = vector.extract_strided_slice %235 {offsets = [0, 64], sizes = [8, 32], strides = [1, 1]} : vector<8x128xf32> to vector<8x32xf32>
    %239 = vector.extract_strided_slice %235 {offsets = [0, 96], sizes = [8, 32], strides = [1, 1]} : vector<8x128xf32> to vector<8x32xf32>
    %240 = arith.mulf %237, %221 : vector<8x32xf32>
    %241 = arith.mulf %236, %238 : vector<8x32xf32>
    %242 = arith.addf %240, %241 : vector<8x32xf32>
    %243 = math.tanh %242 : vector<8x32xf32>
    %244 = arith.mulf %239, %243 : vector<8x32xf32>
    %c8 = arith.constant 8 : index
    %c0_58 = arith.constant 0 : index
    %245 = vector.load %arg18[%c8, %c0_58] : memref<64x32xf32, #tpu.memory_space<vmem>>, vector<8x32xf32>
    tpu.vector_store %arg18[%c8, %c0_58], %244 {strides = array<i32>} : memref<64x32xf32, #tpu.memory_space<vmem>>, vector<8x32xf32>,
    %246 = vector.extract_strided_slice %196 {offsets = [16, 0], sizes = [8, 128], strides = [1, 1]} : vector<64x128xf32> to vector<8x128xf32>
    %247 = arith.addf %246, %202 : vector<8x128xf32>
    %cst_59 = arith.constant dense<0.000000e+00> : vector<8x128xf32>
    %248 = tpu.matmul %244, %203, %cst_59 {dimension_numbers = #tpu.dot_dimension_numbers<[1], [0], [0], [1], [0, 0, 1, 1], [], []>} : vector<8x32xf32>, vector<32x128xf32>, vector<8x128xf32> -> vector<8x128xf32>
    %249 = arith.addf %247, %248 : vector<8x128xf32>
    %250 = math.tanh %249 : vector<8x128xf32>
    %251 = arith.negf %249 : vector<8x128xf32>
    %252 = math.exp %251 : vector<8x128xf32>
    %cst_60 = arith.constant 1.000000e+00 : f32
    %253 = vector.broadcast %cst_60 : f32 to vector<8x128xf32>
    %254 = arith.addf %253, %252 : vector<8x128xf32>
    %255 = arith.divf %253, %254 : vector<8x128xf32>
    %256 = arith.select %11, %250, %255 : vector<8x128xi1>, vector<8x128xf32>
    %257 = vector.extract_strided_slice %256 {offsets = [0, 0], sizes = [8, 32], strides = [1, 1]} : vector<8x128xf32> to vector<8x32xf32>
    %258 = vector.extract_strided_slice %256 {offsets = [0, 32], sizes = [8, 32], strides = [1, 1]} : vector<8x128xf32> to vector<8x32xf32>
    %259 = vector.extract_strided_slice %256 {offsets = [0, 64], sizes = [8, 32], strides = [1, 1]} : vector<8x128xf32> to vector<8x32xf32>
    %260 = vector.extract_strided_slice %256 {offsets = [0, 96], sizes = [8, 32], strides = [1, 1]} : vector<8x128xf32> to vector<8x32xf32>
    %261 = arith.mulf %258, %242 : vector<8x32xf32>
    %262 = arith.mulf %257, %259 : vector<8x32xf32>
    %263 = arith.addf %261, %262 : vector<8x32xf32>
    %264 = math.tanh %263 : vector<8x32xf32>
    %265 = arith.mulf %260, %264 : vector<8x32xf32>
    %c16 = arith.constant 16 : index
    %c0_61 = arith.constant 0 : index
    %266 = vector.load %arg18[%c16, %c0_61] : memref<64x32xf32, #tpu.memory_space<vmem>>, vector<8x32xf32>
    tpu.vector_store %arg18[%c16, %c0_61], %265 {strides = array<i32>} : memref<64x32xf32, #tpu.memory_space<vmem>>, vector<8x32xf32>,
    %267 = vector.extract_strided_slice %196 {offsets = [24, 0], sizes = [8, 128], strides = [1, 1]} : vector<64x128xf32> to vector<8x128xf32>
    %268 = arith.addf %267, %202 : vector<8x128xf32>
    %cst_62 = arith.constant dense<0.000000e+00> : vector<8x128xf32>
    %269 = tpu.matmul %265, %203, %cst_62 {dimension_numbers = #tpu.dot_dimension_numbers<[1], [0], [0], [1], [0, 0, 1, 1], [], []>} : vector<8x32xf32>, vector<32x128xf32>, vector<8x128xf32> -> vector<8x128xf32>
    %270 = arith.addf %268, %269 : vector<8x128xf32>
    %271 = math.tanh %270 : vector<8x128xf32>
    %272 = arith.negf %270 : vector<8x128xf32>
    %273 = math.exp %272 : vector<8x128xf32>
    %cst_63 = arith.constant 1.000000e+00 : f32
    %274 = vector.broadcast %cst_63 : f32 to vector<8x128xf32>
    %275 = arith.addf %274, %273 : vector<8x128xf32>
    %276 = arith.divf %274, %275 : vector<8x128xf32>
    %277 = arith.select %11, %271, %276 : vector<8x128xi1>, vector<8x128xf32>
    %278 = vector.extract_strided_slice %277 {offsets = [0, 0], sizes = [8, 32], strides = [1, 1]} : vector<8x128xf32> to vector<8x32xf32>
    %279 = vector.extract_strided_slice %277 {offsets = [0, 32], sizes = [8, 32], strides = [1, 1]} : vector<8x128xf32> to vector<8x32xf32>
    %280 = vector.extract_strided_slice %277 {offsets = [0, 64], sizes = [8, 32], strides = [1, 1]} : vector<8x128xf32> to vector<8x32xf32>
    %281 = vector.extract_strided_slice %277 {offsets = [0, 96], sizes = [8, 32], strides = [1, 1]} : vector<8x128xf32> to vector<8x32xf32>
    %282 = arith.mulf %279, %263 : vector<8x32xf32>
    %283 = arith.mulf %278, %280 : vector<8x32xf32>
    %284 = arith.addf %282, %283 : vector<8x32xf32>
    %285 = math.tanh %284 : vector<8x32xf32>
    %286 = arith.mulf %281, %285 : vector<8x32xf32>
    %c24 = arith.constant 24 : index
    %c0_64 = arith.constant 0 : index
    %287 = vector.load %arg18[%c24, %c0_64] : memref<64x32xf32, #tpu.memory_space<vmem>>, vector<8x32xf32>
    tpu.vector_store %arg18[%c24, %c0_64], %286 {strides = array<i32>} : memref<64x32xf32, #tpu.memory_space<vmem>>, vector<8x32xf32>,
    %288 = vector.extract_strided_slice %196 {offsets = [32, 0], sizes = [8, 128], strides = [1, 1]} : vector<64x128xf32> to vector<8x128xf32>
    %289 = arith.addf %288, %202 : vector<8x128xf32>
    %cst_65 = arith.constant dense<0.000000e+00> : vector<8x128xf32>
    %290 = tpu.matmul %286, %203, %cst_65 {dimension_numbers = #tpu.dot_dimension_numbers<[1], [0], [0], [1], [0, 0, 1, 1], [], []>} : vector<8x32xf32>, vector<32x128xf32>, vector<8x128xf32> -> vector<8x128xf32>
    %291 = arith.addf %289, %290 : vector<8x128xf32>
    %292 = math.tanh %291 : vector<8x128xf32>
    %293 = arith.negf %291 : vector<8x128xf32>
    %294 = math.exp %293 : vector<8x128xf32>
    %cst_66 = arith.constant 1.000000e+00 : f32
    %295 = vector.broadcast %cst_66 : f32 to vector<8x128xf32>
    %296 = arith.addf %295, %294 : vector<8x128xf32>
    %297 = arith.divf %295, %296 : vector<8x128xf32>
    %298 = arith.select %11, %292, %297 : vector<8x128xi1>, vector<8x128xf32>
    %299 = vector.extract_strided_slice %298 {offsets = [0, 0], sizes = [8, 32], strides = [1, 1]} : vector<8x128xf32> to vector<8x32xf32>
    %300 = vector.extract_strided_slice %298 {offsets = [0, 32], sizes = [8, 32], strides = [1, 1]} : vector<8x128xf32> to vector<8x32xf32>
    %301 = vector.extract_strided_slice %298 {offsets = [0, 64], sizes = [8, 32], strides = [1, 1]} : vector<8x128xf32> to vector<8x32xf32>
    %302 = vector.extract_strided_slice %298 {offsets = [0, 96], sizes = [8, 32], strides = [1, 1]} : vector<8x128xf32> to vector<8x32xf32>
    %303 = arith.mulf %300, %284 : vector<8x32xf32>
    %304 = arith.mulf %299, %301 : vector<8x32xf32>
    %305 = arith.addf %303, %304 : vector<8x32xf32>
    %306 = math.tanh %305 : vector<8x32xf32>
    %307 = arith.mulf %302, %306 : vector<8x32xf32>
    %c32 = arith.constant 32 : index
    %c0_67 = arith.constant 0 : index
    %308 = vector.load %arg18[%c32, %c0_67] : memref<64x32xf32, #tpu.memory_space<vmem>>, vector<8x32xf32>
    tpu.vector_store %arg18[%c32, %c0_67], %307 {strides = array<i32>} : memref<64x32xf32, #tpu.memory_space<vmem>>, vector<8x32xf32>,
    %309 = vector.extract_strided_slice %196 {offsets = [40, 0], sizes = [8, 128], strides = [1, 1]} : vector<64x128xf32> to vector<8x128xf32>
    %310 = arith.addf %309, %202 : vector<8x128xf32>
    %cst_68 = arith.constant dense<0.000000e+00> : vector<8x128xf32>
    %311 = tpu.matmul %307, %203, %cst_68 {dimension_numbers = #tpu.dot_dimension_numbers<[1], [0], [0], [1], [0, 0, 1, 1], [], []>} : vector<8x32xf32>, vector<32x128xf32>, vector<8x128xf32> -> vector<8x128xf32>
    %312 = arith.addf %310, %311 : vector<8x128xf32>
    %313 = math.tanh %312 : vector<8x128xf32>
    %314 = arith.negf %312 : vector<8x128xf32>
    %315 = math.exp %314 : vector<8x128xf32>
    %cst_69 = arith.constant 1.000000e+00 : f32
    %316 = vector.broadcast %cst_69 : f32 to vector<8x128xf32>
    %317 = arith.addf %316, %315 : vector<8x128xf32>
    %318 = arith.divf %316, %317 : vector<8x128xf32>
    %319 = arith.select %11, %313, %318 : vector<8x128xi1>, vector<8x128xf32>
    %320 = vector.extract_strided_slice %319 {offsets = [0, 0], sizes = [8, 32], strides = [1, 1]} : vector<8x128xf32> to vector<8x32xf32>
    %321 = vector.extract_strided_slice %319 {offsets = [0, 32], sizes = [8, 32], strides = [1, 1]} : vector<8x128xf32> to vector<8x32xf32>
    %322 = vector.extract_strided_slice %319 {offsets = [0, 64], sizes = [8, 32], strides = [1, 1]} : vector<8x128xf32> to vector<8x32xf32>
    %323 = vector.extract_strided_slice %319 {offsets = [0, 96], sizes = [8, 32], strides = [1, 1]} : vector<8x128xf32> to vector<8x32xf32>
    %324 = arith.mulf %321, %305 : vector<8x32xf32>
    %325 = arith.mulf %320, %322 : vector<8x32xf32>
    %326 = arith.addf %324, %325 : vector<8x32xf32>
    %327 = math.tanh %326 : vector<8x32xf32>
    %328 = arith.mulf %323, %327 : vector<8x32xf32>
    %c40 = arith.constant 40 : index
    %c0_70 = arith.constant 0 : index
    %329 = vector.load %arg18[%c40, %c0_70] : memref<64x32xf32, #tpu.memory_space<vmem>>, vector<8x32xf32>
    tpu.vector_store %arg18[%c40, %c0_70], %328 {strides = array<i32>} : memref<64x32xf32, #tpu.memory_space<vmem>>, vector<8x32xf32>,
    %330 = vector.extract_strided_slice %196 {offsets = [48, 0], sizes = [8, 128], strides = [1, 1]} : vector<64x128xf32> to vector<8x128xf32>
    %331 = arith.addf %330, %202 : vector<8x128xf32>
    %cst_71 = arith.constant dense<0.000000e+00> : vector<8x128xf32>
    %332 = tpu.matmul %328, %203, %cst_71 {dimension_numbers = #tpu.dot_dimension_numbers<[1], [0], [0], [1], [0, 0, 1, 1], [], []>} : vector<8x32xf32>, vector<32x128xf32>, vector<8x128xf32> -> vector<8x128xf32>
    %333 = arith.addf %331, %332 : vector<8x128xf32>
    %334 = math.tanh %333 : vector<8x128xf32>
    %335 = arith.negf %333 : vector<8x128xf32>
    %336 = math.exp %335 : vector<8x128xf32>
    %cst_72 = arith.constant 1.000000e+00 : f32
    %337 = vector.broadcast %cst_72 : f32 to vector<8x128xf32>
    %338 = arith.addf %337, %336 : vector<8x128xf32>
    %339 = arith.divf %337, %338 : vector<8x128xf32>
    %340 = arith.select %11, %334, %339 : vector<8x128xi1>, vector<8x128xf32>
    %341 = vector.extract_strided_slice %340 {offsets = [0, 0], sizes = [8, 32], strides = [1, 1]} : vector<8x128xf32> to vector<8x32xf32>
    %342 = vector.extract_strided_slice %340 {offsets = [0, 32], sizes = [8, 32], strides = [1, 1]} : vector<8x128xf32> to vector<8x32xf32>
    %343 = vector.extract_strided_slice %340 {offsets = [0, 64], sizes = [8, 32], strides = [1, 1]} : vector<8x128xf32> to vector<8x32xf32>
    %344 = vector.extract_strided_slice %340 {offsets = [0, 96], sizes = [8, 32], strides = [1, 1]} : vector<8x128xf32> to vector<8x32xf32>
    %345 = arith.mulf %342, %326 : vector<8x32xf32>
    %346 = arith.mulf %341, %343 : vector<8x32xf32>
    %347 = arith.addf %345, %346 : vector<8x32xf32>
    %348 = math.tanh %347 : vector<8x32xf32>
    %349 = arith.mulf %344, %348 : vector<8x32xf32>
    %c48 = arith.constant 48 : index
    %c0_73 = arith.constant 0 : index
    %350 = vector.load %arg18[%c48, %c0_73] : memref<64x32xf32, #tpu.memory_space<vmem>>, vector<8x32xf32>
    tpu.vector_store %arg18[%c48, %c0_73], %349 {strides = array<i32>} : memref<64x32xf32, #tpu.memory_space<vmem>>, vector<8x32xf32>,
    %351 = vector.extract_strided_slice %196 {offsets = [56, 0], sizes = [8, 128], strides = [1, 1]} : vector<64x128xf32> to vector<8x128xf32>
    %352 = arith.addf %351, %202 : vector<8x128xf32>
    %cst_74 = arith.constant dense<0.000000e+00> : vector<8x128xf32>
    %353 = tpu.matmul %349, %203, %cst_74 {dimension_numbers = #tpu.dot_dimension_numbers<[1], [0], [0], [1], [0, 0, 1, 1], [], []>} : vector<8x32xf32>, vector<32x128xf32>, vector<8x128xf32> -> vector<8x128xf32>
    %354 = arith.addf %352, %353 : vector<8x128xf32>
    %355 = math.tanh %354 : vector<8x128xf32>
    %356 = arith.negf %354 : vector<8x128xf32>
    %357 = math.exp %356 : vector<8x128xf32>
    %cst_75 = arith.constant 1.000000e+00 : f32
    %358 = vector.broadcast %cst_75 : f32 to vector<8x128xf32>
    %359 = arith.addf %358, %357 : vector<8x128xf32>
    %360 = arith.divf %358, %359 : vector<8x128xf32>
    %361 = arith.select %11, %355, %360 : vector<8x128xi1>, vector<8x128xf32>
    %362 = vector.extract_strided_slice %361 {offsets = [0, 0], sizes = [8, 32], strides = [1, 1]} : vector<8x128xf32> to vector<8x32xf32>
    %363 = vector.extract_strided_slice %361 {offsets = [0, 32], sizes = [8, 32], strides = [1, 1]} : vector<8x128xf32> to vector<8x32xf32>
    %364 = vector.extract_strided_slice %361 {offsets = [0, 64], sizes = [8, 32], strides = [1, 1]} : vector<8x128xf32> to vector<8x32xf32>
    %365 = vector.extract_strided_slice %361 {offsets = [0, 96], sizes = [8, 32], strides = [1, 1]} : vector<8x128xf32> to vector<8x32xf32>
    %366 = arith.mulf %363, %347 : vector<8x32xf32>
    %367 = arith.mulf %362, %364 : vector<8x32xf32>
    %368 = arith.addf %366, %367 : vector<8x32xf32>
    %369 = math.tanh %368 : vector<8x32xf32>
    %370 = arith.mulf %365, %369 : vector<8x32xf32>
    %c56 = arith.constant 56 : index
    %c0_76 = arith.constant 0 : index
    %371 = vector.load %arg18[%c56, %c0_76] : memref<64x32xf32, #tpu.memory_space<vmem>>, vector<8x32xf32>
    tpu.vector_store %arg18[%c56, %c0_76], %370 {strides = array<i32>} : memref<64x32xf32, #tpu.memory_space<vmem>>, vector<8x32xf32>,
    %c0_77 = arith.constant 0 : index
    %c0_78 = arith.constant 0 : index
    %372 = vector.load %arg18[%c0_77, %c0_78] : memref<64x32xf32, #tpu.memory_space<vmem>>, vector<64x32xf32>
    %c0_79 = arith.constant 0 : index
    %c0_80 = arith.constant 0 : index
    %373 = vector.load %arg14[%c0_79, %c0_80] : memref<32x128xf32, #tpu.memory_space<vmem>>, vector<32x128xf32>
    %cst_81 = arith.constant dense<0.000000e+00> : vector<64x128xf32>
    %374 = tpu.matmul %372, %373, %cst_81 {dimension_numbers = #tpu.dot_dimension_numbers<[1], [0], [0], [1], [0, 0, 1, 1], [], []>} : vector<64x32xf32>, vector<32x128xf32>, vector<64x128xf32> -> vector<64x128xf32>
    %c0_82 = arith.constant 0 : index
    %c0_83 = arith.constant 0 : index
    %375 = vector.load %arg15[%c0_82, %c0_83] : memref<1x128xf32, #tpu.memory_space<vmem>>, vector<1x128xf32>
    %376 = vector.broadcast %375 : vector<1x128xf32> to vector<64x128xf32>
    %377 = arith.addf %374, %376 : vector<64x128xf32>
    %c0_84 = arith.constant 0 : index
    %c0_85 = arith.constant 0 : index
    %378 = vector.load %arg17[%c0_84, %c0_85] : memref<64x128xf32, #tpu.memory_space<vmem>>, vector<64x128xf32>
    tpu.vector_store %arg17[%c0_84, %c0_85], %377 {strides = array<i32>} : memref<64x128xf32, #tpu.memory_space<vmem>>, vector<64x128xf32>,
    return
  }
}

</mosaic_0001>

<llo_original>
// kernel: vae_forward.1
$region0: #{vae_forward.1}
  #allocation0 [shape = 'u32[]', space=smem, size = 0x4, offset = 0x4, fixed_abs, tag = 'smem constant byte address 0x4 - core index']
  #allocation1 [shape = 'u32[72,128]{1,0:T(1,128)}', space=vmem, size = 0x9000, scoped, tag = 'internal scratch']
  #allocation2 [shape = 'f32[64,32]{1,0:T(8,128)}', space=vmem, size = 0x8000, scoped, tag = 'scratch operand']
  %s0 = inlined_call_operand.vmem [shape: f32[64,64], index: 0, kind: input, shape index: {}]
  %s1 = inlined_call_operand.vmem [shape: f32[64,32], index: 1, kind: input, shape index: {}]
  %s2 = inlined_call_operand.vmem [shape: f32[8,16], index: 2, kind: input, shape index: {}]
  %s3 = inlined_call_operand.vmem [shape: f32[64,256], index: 3, kind: input, shape index: {}]
  %s4 = inlined_call_operand.vmem [shape: f32[64,256], index: 4, kind: input, shape index: {}]
  %s5 = inlined_call_operand.vmem [shape: f32[1,256], index: 5, kind: input, shape index: {}]
  %s6 = inlined_call_operand.vmem [shape: f32[64,128], index: 6, kind: input, shape index: {}]
  %s7 = inlined_call_operand.vmem [shape: f32[1,128], index: 7, kind: input, shape index: {}]
  %s8 = inlined_call_operand.vmem [shape: f32[16,64], index: 8, kind: input, shape index: {}]
  %s9 = inlined_call_operand.vmem [shape: f32[1,64], index: 9, kind: input, shape index: {}]
  %s10 = inlined_call_operand.vmem [shape: f32[32,128], index: 10, kind: input, shape index: {}]
  %s11 = inlined_call_operand.vmem [shape: f32[16,128], index: 11, kind: input, shape index: {}]
  %s12 = inlined_call_operand.vmem [shape: f32[32,128], index: 12, kind: input, shape index: {}]
  %s13 = inlined_call_operand.vmem [shape: f32[1,128], index: 13, kind: input, shape index: {}]
  %s14 = inlined_call_operand.vmem [shape: f32[32,128], index: 14, kind: input, shape index: {}]
  %s15 = inlined_call_operand.vmem [shape: f32[1,128], index: 15, kind: input, shape index: {}]
  %s16 = inlined_call_operand.vmem [shape: f32[8,128], index: 16, kind: output, shape index: {0}]
  %s17 = inlined_call_operand.vmem [shape: f32[64,128], index: 17, kind: output, shape index: {1}]
  %18 = xla_tuple %s16, %s17
  %s19 = sld [smem:[#allocation0]]
  $region82: #{vae_forward.1} parent=0
    _
  %s21 = ssub.s32 1, %s19
  %s22 = scalar_select 0, %s21, %s19
  // Predicated region
  $region2: #{vae_forward.1} parent=0 // pred_check
    _
  $region3: #{vae_forward.1} parent=0 // pred_check_branch
    %24 = sbr.rel (0) target = $region5
  $region4: #{vae_forward.1} parent=0 // pred_region
    _
  $region5: #{vae_forward.1} parent=0 // pred_fallthru
    _
  // Predicated region
  $region6: #{vae_forward.1} parent=0 // pred_check
    _
  $region7: #{vae_forward.1} parent=0 // pred_check_branch
    %26 = sbr.rel (0) target = $region9
  $region8: #{vae_forward.1} parent=0 // pred_region
    _
  $region9: #{vae_forward.1} parent=0 // pred_fallthru
    _
  // Predicated region
  $region10: #{vae_forward.1} parent=0 // pred_check
    _
  $region11: #{vae_forward.1} parent=0 // pred_check_branch
    %28 = sbr.rel (0) target = $region13
  $region12: #{vae_forward.1} parent=0 // pred_region
    _
  $region13: #{vae_forward.1} parent=0 // pred_fallthru
    _
  // Predicated region
  $region14: #{vae_forward.1} parent=0 // pred_check
    _
  $region15: #{vae_forward.1} parent=0 // pred_check_branch
    %30 = sbr.rel (0) target = $region17
  $region16: #{vae_forward.1} parent=0 // pred_region
    _
  $region17: #{vae_forward.1} parent=0 // pred_fallthru
    _
  // Predicated region
  $region18: #{vae_forward.1} parent=0 // pred_check
    _
  $region19: #{vae_forward.1} parent=0 // pred_check_branch
    %32 = sbr.rel (0) target = $region21
  $region20: #{vae_forward.1} parent=0 // pred_region
    _
  $region21: #{vae_forward.1} parent=0 // pred_fallthru
    _
  // Predicated region
  $region22: #{vae_forward.1} parent=0 // pred_check
    _
  $region23: #{vae_forward.1} parent=0 // pred_check_branch
    %34 = sbr.rel (0) target = $region25
  $region24: #{vae_forward.1} parent=0 // pred_region
    _
  $region25: #{vae_forward.1} parent=0 // pred_fallthru
    _
  // Predicated region
  $region26: #{vae_forward.1} parent=0 // pred_check
    _
  $region27: #{vae_forward.1} parent=0 // pred_check_branch
    %36 = sbr.rel (0) target = $region29
  $region28: #{vae_forward.1} parent=0 // pred_region
    _
  $region29: #{vae_forward.1} parent=0 // pred_fallthru
    _
  // Predicated region
  $region30: #{vae_forward.1} parent=0 // pred_check
    _
  $region31: #{vae_forward.1} parent=0 // pred_check_branch
    %38 = sbr.rel (0) target = $region33
  $region32: #{vae_forward.1} parent=0 // pred_region
    _
  $region33: #{vae_forward.1} parent=0 // pred_fallthru
    _
  // Predicated region
  $region34: #{vae_forward.1} parent=0 // pred_check
    _
  $region35: #{vae_forward.1} parent=0 // pred_check_branch
    %40 = sbr.rel (0) target = $region37
  $region36: #{vae_forward.1} parent=0 // pred_region
    _
  $region37: #{vae_forward.1} parent=0 // pred_fallthru
    _
  // Predicated region
  $region38: #{vae_forward.1} parent=0 // pred_check
    _
  $region39: #{vae_forward.1} parent=0 // pred_check_branch
    %42 = sbr.rel (0) target = $region41
  $region40: #{vae_forward.1} parent=0 // pred_region
    _
  $region41: #{vae_forward.1} parent=0 // pred_fallthru
    _
  // Predicated region
  $region42: #{vae_forward.1} parent=0 // pred_check
    _
  $region43: #{vae_forward.1} parent=0 // pred_check_branch
    %44 = sbr.rel (0) target = $region45
  $region44: #{vae_forward.1} parent=0 // pred_region
    _
  $region45: #{vae_forward.1} parent=0 // pred_fallthru
    _
  // Predicated region
  $region46: #{vae_forward.1} parent=0 // pred_check
    _
  $region47: #{vae_forward.1} parent=0 // pred_check_branch
    %46 = sbr.rel (0) target = $region49
  $region48: #{vae_forward.1} parent=0 // pred_region
    _
  $region49: #{vae_forward.1} parent=0 // pred_fallthru
    _
  // Predicated region
  $region50: #{vae_forward.1} parent=0 // pred_check
    _
  $region51: #{vae_forward.1} parent=0 // pred_check_branch
    %48 = sbr.rel (0) target = $region53
  $region52: #{vae_forward.1} parent=0 // pred_region
    _
  $region53: #{vae_forward.1} parent=0 // pred_fallthru
    _
  // Predicated region
  $region54: #{vae_forward.1} parent=0 // pred_check
    _
  $region55: #{vae_forward.1} parent=0 // pred_check_branch
    %50 = sbr.rel (0) target = $region57
  $region56: #{vae_forward.1} parent=0 // pred_region
    _
  $region57: #{vae_forward.1} parent=0 // pred_fallthru
    _
  // Predicated region
  $region58: #{vae_forward.1} parent=0 // pred_check
    _
  $region59: #{vae_forward.1} parent=0 // pred_check_branch
    %52 = sbr.rel (0) target = $region61
  $region60: #{vae_forward.1} parent=0 // pred_region
    _
  $region61: #{vae_forward.1} parent=0 // pred_fallthru
    _
  // Predicated region
  $region62: #{vae_forward.1} parent=0 // pred_check
    _
  $region63: #{vae_forward.1} parent=0 // pred_check_branch
    %54 = sbr.rel (0) target = $region65
  $region64: #{vae_forward.1} parent=0 // pred_region
    _
  $region65: #{vae_forward.1} parent=0 // pred_fallthru
    _
  %v55 = vlaneseq
  %v56 = vand.u32 %v55, 127
  %v57 = vadd.s32 %v56, 128
  %vm58 = vcmp.ge.s32.totalorder %v56, 128
  %vm59 = vcmp.ge.s32.totalorder %v57, 128
  %vm60 = vcmp.lt.s32.totalorder %v56, 192
  %vm61 = vcmp.lt.s32.totalorder %v57, 192
  %vm62 = vmand %vm58, %vm60
  %vm63 = vmand %vm59, %vm61
  %vm64 = vcmp.ge.s32.totalorder %v56, 64
  %vm65 = vcmp.lt.s32.totalorder %v56, 96
  %vm66 = vmand %vm64, %vm65
  %v67 = vld [vmem:[%s0] sm:$0xff]
  %v68 = vld [vmem:[%s0 + $0x8] sm:$0xff]
  %v69 = vld [vmem:[%s0 + $0x10] sm:$0xff]
  %v70 = vld [vmem:[%s0 + $0x18] sm:$0xff]
  %v71 = vld [vmem:[%s0 + $0x20] sm:$0xff]
  %v72 = vld [vmem:[%s0 + $0x28] sm:$0xff]
  %v73 = vld [vmem:[%s0 + $0x30] sm:$0xff]
  %v74 = vld [vmem:[%s0 + $0x38] sm:$0xff]
  %v75 = vld [vmem:[%s3] sm:$0xff]
  %v76 = vld [vmem:[%s3 + $0x8] sm:$0xff]
  %v77 = vld [vmem:[%s3 + $0x10] sm:$0xff]
  %v78 = vld [vmem:[%s3 + $0x18] sm:$0xff]
  %v79 = vld [vmem:[%s3 + $0x20] sm:$0xff]
  %v80 = vld [vmem:[%s3 + $0x28] sm:$0xff]
  %v81 = vld [vmem:[%s3 + $0x30] sm:$0xff]
  %v82 = vld [vmem:[%s3 + $0x38] sm:$0xff]
  %v83 = vld [vmem:[%s3 + $0x40] sm:$0xff]
  %v84 = vld [vmem:[%s3 + $0x48] sm:$0xff]
  %v85 = vld [vmem:[%s3 + $0x50] sm:$0xff]
  %v86 = vld [vmem:[%s3 + $0x58] sm:$0xff]
  %v87 = vld [vmem:[%s3 + $0x60] sm:$0xff]
  %v88 = vld [vmem:[%s3 + $0x68] sm:$0xff]
  %v89 = vld [vmem:[%s3 + $0x70] sm:$0xff]
  %v90 = vld [vmem:[%s3 + $0x78] sm:$0xff]
  %v91 = vld [vmem:[%s5] sm:$0x3]
  %v93 = vperm.slane %v91, 0
  %v94 = vperm.slane %v91, 1
  %vm97 = vcmask 523264
  %v99 = vsel %vm97, %v67, 0
  %v102 = vsel %vm97, %v68, 0
  %v105 = vsel %vm97, %v69, 0
  %v108 = vsel %vm97, %v70, 0
  %v111 = vsel %vm97, %v71, 0
  %v114 = vsel %vm97, %v72, 0
  %v117 = vsel %vm97, %v73, 0
  %v120 = vsel %vm97, %v74, 0
  %122 = vmatpush.msra.mxu0 0.0
  %123 = vmatpush.msra.mxu0 0.0
  %124 = vmatpush.msra.mxu0 0.0
  %125 = vmatpush.msra.mxu0 0.0
  %126 = vmatpush.msra.mxu0 0.0
  %127 = vmatpush.msra.mxu0 0.0
  %128 = vmatpush.msra.mxu0 0.0
  %129 = vmatpush.msra.mxu0 0.0
  %130 = vmatpush.msra.mxu0 %v89
  %131 = vmatpush.msra.mxu0 %v87
  %132 = vmatpush.msra.mxu0 %v85
  %133 = vmatpush.msra.mxu0 %v83
  %134 = vmatpush.msra.mxu0 %v81
  %135 = vmatpush.msra.mxu0 %v79
  %136 = vmatpush.msra.mxu0 %v77
  %137 = vmatpush.msra.mxu0 %v75
  %138 = vmatmul.f32.gmra.mxu0 %v99
  %v139 = vpop.f32.mrf.mxu0
  %v140 = vadd.f32 %v93, %v139
  %141 = vmatmul.f32.gmra.mxu0 %v102
  %v142 = vpop.f32.mrf.mxu0
  %v143 = vadd.f32 %v93, %v142
  %144 = vmatmul.f32.gmra.mxu0 %v105
  %v145 = vpop.f32.mrf.mxu0
  %v146 = vadd.f32 %v93, %v145
  %147 = vmatmul.f32.gmra.mxu0 %v108
  %v148 = vpop.f32.mrf.mxu0
  %v149 = vadd.f32 %v93, %v148
  %150 = vmatmul.f32.gmra.mxu0 %v111
  %v151 = vpop.f32.mrf.mxu0
  %v152 = vadd.f32 %v93, %v151
  %153 = vmatmul.f32.gmra.mxu0 %v114
  %v154 = vpop.f32.mrf.mxu0
  %v155 = vadd.f32 %v93, %v154
  %156 = vmatmul.f32.gmra.mxu0 %v117
  %v157 = vpop.f32.mrf.mxu0
  %v158 = vadd.f32 %v93, %v157
  %159 = vmatmul.f32.gmra.mxu0 %v120
  %v160 = vpop.f32.mrf.mxu0
  %v161 = vadd.f32 %v93, %v160
  %162 = vdwg.mxu0
  %163 = vmatpush.msra.mxu0 0.0
  %164 = vmatpush.msra.mxu0 0.0
  %165 = vmatpush.msra.mxu0 0.0
  %166 = vmatpush.msra.mxu0 0.0
  %167 = vmatpush.msra.mxu0 0.0
  %168 = vmatpush.msra.mxu0 0.0
  %169 = vmatpush.msra.mxu0 0.0
  %170 = vmatpush.msra.mxu0 0.0
  %171 = vmatpush.msra.mxu0 %v90
  %172 = vmatpush.msra.mxu0 %v88
  %173 = vmatpush.msra.mxu0 %v86
  %174 = vmatpush.msra.mxu0 %v84
  %175 = vmatpush.msra.mxu0 %v82
  %176 = vmatpush.msra.mxu0 %v80
  %177 = vmatpush.msra.mxu0 %v78
  %178 = vmatpush.msra.mxu0 %v76
  %179 = vmatmul.f32.gmra.mxu0 %v99
  %v180 = vpop.f32.mrf.mxu0
  %v181 = vadd.f32 %v94, %v180
  %182 = vmatmul.f32.gmra.mxu0 %v102
  %v183 = vpop.f32.mrf.mxu0
  %v184 = vadd.f32 %v94, %v183
  %185 = vmatmul.f32.gmra.mxu0 %v105
  %v186 = vpop.f32.mrf.mxu0
  %v187 = vadd.f32 %v94, %v186
  %188 = vmatmul.f32.gmra.mxu0 %v108
  %v189 = vpop.f32.mrf.mxu0
  %v190 = vadd.f32 %v94, %v189
  %191 = vmatmul.f32.gmra.mxu0 %v111
  %v192 = vpop.f32.mrf.mxu0
  %v193 = vadd.f32 %v94, %v192
  %194 = vmatmul.f32.gmra.mxu0 %v114
  %v195 = vpop.f32.mrf.mxu0
  %v196 = vadd.f32 %v94, %v195
  %197 = vmatmul.f32.gmra.mxu0 %v117
  %v198 = vpop.f32.mrf.mxu0
  %v199 = vadd.f32 %v94, %v198
  %200 = vmatmul.f32.gmra.mxu0 %v120
  %v201 = vpop.f32.mrf.mxu0
  %v202 = vadd.f32 %v94, %v201
  %203 = vdwg.mxu0
  %v204 = vld [vmem:[%s4] sm:$0xff]
  %v205 = vld [vmem:[%s4 + $0x8] sm:$0xff]
  %v206 = vld [vmem:[%s4 + $0x10] sm:$0xff]
  %v207 = vld [vmem:[%s4 + $0x18] sm:$0xff]
  %v208 = vld [vmem:[%s4 + $0x20] sm:$0xff]
  %v209 = vld [vmem:[%s4 + $0x28] sm:$0xff]
  %v210 = vld [vmem:[%s4 + $0x30] sm:$0xff]
  %v211 = vld [vmem:[%s4 + $0x38] sm:$0xff]
  %v212 = vld [vmem:[%s4 + $0x40] sm:$0xff]
  %v213 = vld [vmem:[%s4 + $0x48] sm:$0xff]
  %v214 = vld [vmem:[%s4 + $0x50] sm:$0xff]
  %v215 = vld [vmem:[%s4 + $0x58] sm:$0xff]
  %v216 = vld [vmem:[%s4 + $0x60] sm:$0xff]
  %v217 = vld [vmem:[%s4 + $0x68] sm:$0xff]
  %v218 = vld [vmem:[%s4 + $0x70] sm:$0xff]
  %v219 = vld [vmem:[%s4 + $0x78] sm:$0xff]
  %v221 = vsel %vm97, 0.0, 0
  %223 = vmatpush.msra.mxu0 0.0
  %224 = vmatpush.msra.mxu0 0.0
  %225 = vmatpush.msra.mxu0 0.0
  %226 = vmatpush.msra.mxu0 0.0
  %227 = vmatpush.msra.mxu0 0.0
  %228 = vmatpush.msra.mxu0 0.0
  %229 = vmatpush.msra.mxu0 0.0
  %230 = vmatpush.msra.mxu0 0.0
  %231 = vmatpush.msra.mxu0 %v218
  %232 = vmatpush.msra.mxu0 %v216
  %233 = vmatpush.msra.mxu0 %v214
  %234 = vmatpush.msra.mxu0 %v212
  %235 = vmatpush.msra.mxu0 %v210
  %236 = vmatpush.msra.mxu0 %v208
  %237 = vmatpush.msra.mxu0 %v206
  %238 = vmatpush.msra.mxu0 %v204
  %239 = vmatmul.f32.gmra.mxu0 %v221
  %v240 = vpop.f32.mrf.mxu0
  %v241 = vadd.f32 0.0, %v240
  %242 = vdwg.mxu0
  %243 = vmatpush.msra.mxu0 0.0
  %244 = vmatpush.msra.mxu0 0.0
  %245 = vmatpush.msra.mxu0 0.0
  %246 = vmatpush.msra.mxu0 0.0
  %247 = vmatpush.msra.mxu0 0.0
  %248 = vmatpush.msra.mxu0 0.0
  %249 = vmatpush.msra.mxu0 0.0
  %250 = vmatpush.msra.mxu0 0.0
  %251 = vmatpush.msra.mxu0 %v219
  %252 = vmatpush.msra.mxu0 %v217
  %253 = vmatpush.msra.mxu0 %v215
  %254 = vmatpush.msra.mxu0 %v213
  %255 = vmatpush.msra.mxu0 %v211
  %256 = vmatpush.msra.mxu0 %v209
  %257 = vmatpush.msra.mxu0 %v207
  %258 = vmatpush.msra.mxu0 %v205
  %259 = vmatmul.f32.gmra.mxu0 %v221
  %v260 = vpop.f32.mrf.mxu0
  %v261 = vadd.f32 0.0, %v260
  %262 = vdwg.mxu0
  %v263 = vadd.f32 %v140, %v241
  %v264 = vadd.f32 %v181, %v261
  %v265 = vtanh.pop %v263
  %v266 = vtanh.pop %v264
  %v267 = vxor.u32 %v263, 2147483648
  %v268 = vxor.u32 %v264, 2147483648
  %v269 = vmul.f32 %v267, 1.442695
  %v270 = vpow.pop %v269
  %v271 = vmul.f32 %v268, 1.442695
  %v272 = vpow.pop %v271
  %v273 = vadd.f32 %v270, 1.0
  %v274 = vadd.f32 %v272, 1.0
  %v275 = vrcp.pop %v273
  %v276 = vmul.f32 %v273, %v275
  %v277 = vsub.f32 1.0, %v276
  %v278 = vmul.f32 %v275, %v277
  %v279 = vadd.f32 %v275, %v278
  %vm280 = vweird.f32 %v273
  %vm281 = vweird.f32 %v275
  %vm282 = vmor %vm280, %vm281
  %v283 = vsel %vm282, %v275, %v279
  %v284 = vand.u32 2147483647, %v273
  %vm285 = vcmp.eq.f32.partialorder %v284, 8.507059e+37
  %v286 = vand.u32 %v273, 2147483648
  %v287 = vor.u32 1.1754944e-38, %v286
  %v288 = vsel %vm285, %v287, %v283
  %v289 = vmul.f32 1.0, %v288
  %v290 = vrcp.pop %v274
  %v291 = vmul.f32 %v274, %v290
  %v292 = vsub.f32 1.0, %v291
  %v293 = vmul.f32 %v290, %v292
  %v294 = vadd.f32 %v290, %v293
  %vm295 = vweird.f32 %v274
  %vm296 = vweird.f32 %v290
  %vm297 = vmor %vm295, %vm296
  %v298 = vsel %vm297, %v290, %v294
  %v299 = vand.u32 2147483647, %v274
  %vm300 = vcmp.eq.f32.partialorder %v299, 8.507059e+37
  %v301 = vand.u32 %v274, 2147483648
  %v302 = vor.u32 1.1754944e-38, %v301
  %v303 = vsel %vm300, %v302, %v298
  %v304 = vmul.f32 1.0, %v303
  %v305 = vsel %vm62, %v265, %v289
  %v306 = vsel %vm63, %v266, %v304
  %v307 = vmul.f32 %v305, 0.0
  %v308 = vmul.f32 %v305, %v306
  %310 = vrot.lane.b32.xlu0 %v308, 64
  %v311 = vpop.permute.xlu0 %310
  %v313 = vadd.f32 %v307, %v311
  %v314 = vtanh.pop %v313
  %v315 = vmul.f32 %v306, %v314
  %317 = vrot.lane.b32.xlu0 %v315, 64
  %v318 = vpop.permute.xlu0 %317
  %v319 = vsel %vm97, %v318, 0
  %321 = vmatpush.msra.mxu0 0.0
  %322 = vmatpush.msra.mxu0 0.0
  %323 = vmatpush.msra.mxu0 0.0
  %324 = vmatpush.msra.mxu0 0.0
  %325 = vmatpush.msra.mxu0 0.0
  %326 = vmatpush.msra.mxu0 0.0
  %327 = vmatpush.msra.mxu0 0.0
  %328 = vmatpush.msra.mxu0 0.0
  %329 = vmatpush.msra.mxu0 %v218
  %330 = vmatpush.msra.mxu0 %v216
  %331 = vmatpush.msra.mxu0 %v214
  %332 = vmatpush.msra.mxu0 %v212
  %333 = vmatpush.msra.mxu0 %v210
  %334 = vmatpush.msra.mxu0 %v208
  %335 = vmatpush.msra.mxu0 %v206
  %336 = vmatpush.msra.mxu0 %v204
  %337 = vmatmul.f32.gmra.mxu0 %v319
  %v338 = vpop.f32.mrf.mxu0
  %v339 = vadd.f32 0.0, %v338
  %340 = vdwg.mxu0
  %341 = vmatpush.msra.mxu0 0.0
  %342 = vmatpush.msra.mxu0 0.0
  %343 = vmatpush.msra.mxu0 0.0
  %344 = vmatpush.msra.mxu0 0.0
  %345 = vmatpush.msra.mxu0 0.0
  %346 = vmatpush.msra.mxu0 0.0
  %347 = vmatpush.msra.mxu0 0.0
  %348 = vmatpush.msra.mxu0 0.0
  %349 = vmatpush.msra.mxu0 %v219
  %350 = vmatpush.msra.mxu0 %v217
  %351 = vmatpush.msra.mxu0 %v215
  %352 = vmatpush.msra.mxu0 %v213
  %353 = vmatpush.msra.mxu0 %v211
  %354 = vmatpush.msra.mxu0 %v209
  %355 = vmatpush.msra.mxu0 %v207
  %356 = vmatpush.msra.mxu0 %v205
  %357 = vmatmul.f32.gmra.mxu0 %v319
  %v358 = vpop.f32.mrf.mxu0
  %v359 = vadd.f32 0.0, %v358
  %360 = vdwg.mxu0
  %v361 = vadd.f32 %v143, %v339
  %v362 = vadd.f32 %v184, %v359
  %v363 = vtanh.pop %v361
  %v364 = vtanh.pop %v362
  %v365 = vxor.u32 %v361, 2147483648
  %v366 = vxor.u32 %v362, 2147483648
  %v367 = vmul.f32 %v365, 1.442695
  %v368 = vpow.pop %v367
  %v369 = vmul.f32 %v366, 1.442695
  %v370 = vpow.pop %v369
  %v371 = vadd.f32 %v368, 1.0
  %v372 = vadd.f32 %v370, 1.0
  %v373 = vrcp.pop %v371
  %v374 = vmul.f32 %v371, %v373
  %v375 = vsub.f32 1.0, %v374
  %v376 = vmul.f32 %v373, %v375
  %v377 = vadd.f32 %v373, %v376
  %vm378 = vweird.f32 %v371
  %vm379 = vweird.f32 %v373
  %vm380 = vmor %vm378, %vm379
  %v381 = vsel %vm380, %v373, %v377
  %v382 = vand.u32 2147483647, %v371
  %vm383 = vcmp.eq.f32.partialorder %v382, 8.507059e+37
  %v384 = vand.u32 %v371, 2147483648
  %v385 = vor.u32 1.1754944e-38, %v384
  %v386 = vsel %vm383, %v385, %v381
  %v387 = vmul.f32 1.0, %v386
  %v388 = vrcp.pop %v372
  %v389 = vmul.f32 %v372, %v388
  %v390 = vsub.f32 1.0, %v389
  %v391 = vmul.f32 %v388, %v390
  %v392 = vadd.f32 %v388, %v391
  %vm393 = vweird.f32 %v372
  %vm394 = vweird.f32 %v388
  %vm395 = vmor %vm393, %vm394
  %v396 = vsel %vm395, %v388, %v392
  %v397 = vand.u32 2147483647, %v372
  %vm398 = vcmp.eq.f32.partialorder %v397, 8.507059e+37
  %v399 = vand.u32 %v372, 2147483648
  %v400 = vor.u32 1.1754944e-38, %v399
  %v401 = vsel %vm398, %v400, %v396
  %v402 = vmul.f32 1.0, %v401
  %v403 = vsel %vm62, %v363, %v387
  %v404 = vsel %vm63, %v364, %v402
  %v405 = vmul.f32 %v403, %v313
  %v406 = vmul.f32 %v403, %v404
  %408 = vrot.lane.b32.xlu0 %v406, 64
  %v409 = vpop.permute.xlu0 %408
  %v411 = vadd.f32 %v405, %v409
  %v412 = vtanh.pop %v411
  %v413 = vmul.f32 %v404, %v412
  %415 = vrot.lane.b32.xlu0 %v413, 64
  %v416 = vpop.permute.xlu0 %415
  %v417 = vsel %vm97, %v416, 0
  %419 = vmatpush.msra.mxu0 0.0
  %420 = vmatpush.msra.mxu0 0.0
  %421 = vmatpush.msra.mxu0 0.0
  %422 = vmatpush.msra.mxu0 0.0
  %423 = vmatpush.msra.mxu0 0.0
  %424 = vmatpush.msra.mxu0 0.0
  %425 = vmatpush.msra.mxu0 0.0
  %426 = vmatpush.msra.mxu0 0.0
  %427 = vmatpush.msra.mxu0 %v218
  %428 = vmatpush.msra.mxu0 %v216
  %429 = vmatpush.msra.mxu0 %v214
  %430 = vmatpush.msra.mxu0 %v212
  %431 = vmatpush.msra.mxu0 %v210
  %432 = vmatpush.msra.mxu0 %v208
  %433 = vmatpush.msra.mxu0 %v206
  %434 = vmatpush.msra.mxu0 %v204
  %435 = vmatmul.f32.gmra.mxu0 %v417
  %v436 = vpop.f32.mrf.mxu0
  %v437 = vadd.f32 0.0, %v436
  %438 = vdwg.mxu0
  %439 = vmatpush.msra.mxu0 0.0
  %440 = vmatpush.msra.mxu0 0.0
  %441 = vmatpush.msra.mxu0 0.0
  %442 = vmatpush.msra.mxu0 0.0
  %443 = vmatpush.msra.mxu0 0.0
  %444 = vmatpush.msra.mxu0 0.0
  %445 = vmatpush.msra.mxu0 0.0
  %446 = vmatpush.msra.mxu0 0.0
  %447 = vmatpush.msra.mxu0 %v219
  %448 = vmatpush.msra.mxu0 %v217
  %449 = vmatpush.msra.mxu0 %v215
  %450 = vmatpush.msra.mxu0 %v213
  %451 = vmatpush.msra.mxu0 %v211
  %452 = vmatpush.msra.mxu0 %v209
  %453 = vmatpush.msra.mxu0 %v207
  %454 = vmatpush.msra.mxu0 %v205
  %455 = vmatmul.f32.gmra.mxu0 %v417
  %v456 = vpop.f32.mrf.mxu0
  %v457 = vadd.f32 0.0, %v456
  %458 = vdwg.mxu0
  %v459 = vadd.f32 %v146, %v437
  %v460 = vadd.f32 %v187, %v457
  %v461 = vtanh.pop %v459
  %v462 = vtanh.pop %v460
  %v463 = vxor.u32 %v459, 2147483648
  %v464 = vxor.u32 %v460, 2147483648
  %v465 = vmul.f32 %v463, 1.442695
  %v466 = vpow.pop %v465
  %v467 = vmul.f32 %v464, 1.442695
  %v468 = vpow.pop %v467
  %v469 = vadd.f32 %v466, 1.0
  %v470 = vadd.f32 %v468, 1.0
  %v471 = vrcp.pop %v469
  %v472 = vmul.f32 %v469, %v471
  %v473 = vsub.f32 1.0, %v472
  %v474 = vmul.f32 %v471, %v473
  %v475 = vadd.f32 %v471, %v474
  %vm476 = vweird.f32 %v469
  %vm477 = vweird.f32 %v471
  %vm478 = vmor %vm476, %vm477
  %v479 = vsel %vm478, %v471, %v475
  %v480 = vand.u32 2147483647, %v469
  %vm481 = vcmp.eq.f32.partialorder %v480, 8.507059e+37
  %v482 = vand.u32 %v469, 2147483648
  %v483 = vor.u32 1.1754944e-38, %v482
  %v484 = vsel %vm481, %v483, %v479
  %v485 = vmul.f32 1.0, %v484
  %v486 = vrcp.pop %v470
  %v487 = vmul.f32 %v470, %v486
  %v488 = vsub.f32 1.0, %v487
  %v489 = vmul.f32 %v486, %v488
  %v490 = vadd.f32 %v486, %v489
  %vm491 = vweird.f32 %v470
  %vm492 = vweird.f32 %v486
  %vm493 = vmor %vm491, %vm492
  %v494 = vsel %vm493, %v486, %v490
  %v495 = vand.u32 2147483647, %v470
  %vm496 = vcmp.eq.f32.partialorder %v495, 8.507059e+37
  %v497 = vand.u32 %v470, 2147483648
  %v498 = vor.u32 1.1754944e-38, %v497
  %v499 = vsel %vm496, %v498, %v494
  %v500 = vmul.f32 1.0, %v499
  %v501 = vsel %vm62, %v461, %v485
  %v502 = vsel %vm63, %v462, %v500
  %v503 = vmul.f32 %v501, %v411
  %v504 = vmul.f32 %v501, %v502
  %506 = vrot.lane.b32.xlu0 %v504, 64
  %v507 = vpop.permute.xlu0 %506
  %v509 = vadd.f32 %v503, %v507
  %v510 = vtanh.pop %v509
  %v511 = vmul.f32 %v502, %v510
  %513 = vrot.lane.b32.xlu0 %v511, 64
  %v514 = vpop.permute.xlu0 %513
  %v515 = vsel %vm97, %v514, 0
  %517 = vmatpush.msra.mxu0 0.0
  %518 = vmatpush.msra.mxu0 0.0
  %519 = vmatpush.msra.mxu0 0.0
  %520 = vmatpush.msra.mxu0 0.0
  %521 = vmatpush.msra.mxu0 0.0
  %522 = vmatpush.msra.mxu0 0.0
  %523 = vmatpush.msra.mxu0 0.0
  %524 = vmatpush.msra.mxu0 0.0
  %525 = vmatpush.msra.mxu0 %v218
  %526 = vmatpush.msra.mxu0 %v216
  %527 = vmatpush.msra.mxu0 %v214
  %528 = vmatpush.msra.mxu0 %v212
  %529 = vmatpush.msra.mxu0 %v210
  %530 = vmatpush.msra.mxu0 %v208
  %531 = vmatpush.msra.mxu0 %v206
  %532 = vmatpush.msra.mxu0 %v204
  %533 = vmatmul.f32.gmra.mxu0 %v515
  %v534 = vpop.f32.mrf.mxu0
  %v535 = vadd.f32 0.0, %v534
  %536 = vdwg.mxu0
  %537 = vmatpush.msra.mxu0 0.0
  %538 = vmatpush.msra.mxu0 0.0
  %539 = vmatpush.msra.mxu0 0.0
  %540 = vmatpush.msra.mxu0 0.0
  %541 = vmatpush.msra.mxu0 0.0
  %542 = vmatpush.msra.mxu0 0.0
  %543 = vmatpush.msra.mxu0 0.0
  %544 = vmatpush.msra.mxu0 0.0
  %545 = vmatpush.msra.mxu0 %v219
  %546 = vmatpush.msra.mxu0 %v217
  %547 = vmatpush.msra.mxu0 %v215
  %548 = vmatpush.msra.mxu0 %v213
  %549 = vmatpush.msra.mxu0 %v211
  %550 = vmatpush.msra.mxu0 %v209
  %551 = vmatpush.msra.mxu0 %v207
  %552 = vmatpush.msra.mxu0 %v205
  %553 = vmatmul.f32.gmra.mxu0 %v515
  %v554 = vpop.f32.mrf.mxu0
  %v555 = vadd.f32 0.0, %v554
  %556 = vdwg.mxu0
  %v557 = vadd.f32 %v149, %v535
  %v558 = vadd.f32 %v190, %v555
  %v559 = vtanh.pop %v557
  %v560 = vtanh.pop %v558
  %v561 = vxor.u32 %v557, 2147483648
  %v562 = vxor.u32 %v558, 2147483648
  %v563 = vmul.f32 %v561, 1.442695
  %v564 = vpow.pop %v563
  %v565 = vmul.f32 %v562, 1.442695
  %v566 = vpow.pop %v565
  %v567 = vadd.f32 %v564, 1.0
  %v568 = vadd.f32 %v566, 1.0
  %v569 = vrcp.pop %v567
  %v570 = vmul.f32 %v567, %v569
  %v571 = vsub.f32 1.0, %v570
  %v572 = vmul.f32 %v569, %v571
  %v573 = vadd.f32 %v569, %v572
  %vm574 = vweird.f32 %v567
  %vm575 = vweird.f32 %v569
  %vm576 = vmor %vm574, %vm575
  %v577 = vsel %vm576, %v569, %v573
  %v578 = vand.u32 2147483647, %v567
  %vm579 = vcmp.eq.f32.partialorder %v578, 8.507059e+37
  %v580 = vand.u32 %v567, 2147483648
  %v581 = vor.u32 1.1754944e-38, %v580
  %v582 = vsel %vm579, %v581, %v577
  %v583 = vmul.f32 1.0, %v582
  %v584 = vrcp.pop %v568
  %v585 = vmul.f32 %v568, %v584
  %v586 = vsub.f32 1.0, %v585
  %v587 = vmul.f32 %v584, %v586
  %v588 = vadd.f32 %v584, %v587
  %vm589 = vweird.f32 %v568
  %vm590 = vweird.f32 %v584
  %vm591 = vmor %vm589, %vm590
  %v592 = vsel %vm591, %v584, %v588
  %v593 = vand.u32 2147483647, %v568
  %vm594 = vcmp.eq.f32.partialorder %v593, 8.507059e+37
  %v595 = vand.u32 %v568, 2147483648
  %v596 = vor.u32 1.1754944e-38, %v595
  %v597 = vsel %vm594, %v596, %v592
  %v598 = vmul.f32 1.0, %v597
  %v599 = vsel %vm62, %v559, %v583
  %v600 = vsel %vm63, %v560, %v598
  %v601 = vmul.f32 %v599, %v509
  %v602 = vmul.f32 %v599, %v600
  %604 = vrot.lane.b32.xlu0 %v602, 64
  %v605 = vpop.permute.xlu0 %604
  %v607 = vadd.f32 %v601, %v605
  %v608 = vtanh.pop %v607
  %v609 = vmul.f32 %v600, %v608
  %611 = vrot.lane.b32.xlu0 %v609, 64
  %v612 = vpop.permute.xlu0 %611
  %v613 = vsel %vm97, %v612, 0
  %615 = vmatpush.msra.mxu0 0.0
  %616 = vmatpush.msra.mxu0 0.0
  %617 = vmatpush.msra.mxu0 0.0
  %618 = vmatpush.msra.mxu0 0.0
  %619 = vmatpush.msra.mxu0 0.0
  %620 = vmatpush.msra.mxu0 0.0
  %621 = vmatpush.msra.mxu0 0.0
  %622 = vmatpush.msra.mxu0 0.0
  %623 = vmatpush.msra.mxu0 %v218
  %624 = vmatpush.msra.mxu0 %v216
  %625 = vmatpush.msra.mxu0 %v214
  %626 = vmatpush.msra.mxu0 %v212
  %627 = vmatpush.msra.mxu0 %v210
  %628 = vmatpush.msra.mxu0 %v208
  %629 = vmatpush.msra.mxu0 %v206
  %630 = vmatpush.msra.mxu0 %v204
  %631 = vmatmul.f32.gmra.mxu0 %v613
  %v632 = vpop.f32.mrf.mxu0
  %v633 = vadd.f32 0.0, %v632
  %634 = vdwg.mxu0
  %635 = vmatpush.msra.mxu0 0.0
  %636 = vmatpush.msra.mxu0 0.0
  %637 = vmatpush.msra.mxu0 0.0
  %638 = vmatpush.msra.mxu0 0.0
  %639 = vmatpush.msra.mxu0 0.0
  %640 = vmatpush.msra.mxu0 0.0
  %641 = vmatpush.msra.mxu0 0.0
  %642 = vmatpush.msra.mxu0 0.0
  %643 = vmatpush.msra.mxu0 %v219
  %644 = vmatpush.msra.mxu0 %v217
  %645 = vmatpush.msra.mxu0 %v215
  %646 = vmatpush.msra.mxu0 %v213
  %647 = vmatpush.msra.mxu0 %v211
  %648 = vmatpush.msra.mxu0 %v209
  %649 = vmatpush.msra.mxu0 %v207
  %650 = vmatpush.msra.mxu0 %v205
  %651 = vmatmul.f32.gmra.mxu0 %v613
  %v652 = vpop.f32.mrf.mxu0
  %v653 = vadd.f32 0.0, %v652
  %654 = vdwg.mxu0
  %v655 = vadd.f32 %v152, %v633
  %v656 = vadd.f32 %v193, %v653
  %v657 = vtanh.pop %v655
  %v658 = vtanh.pop %v656
  %v659 = vxor.u32 %v655, 2147483648
  %v660 = vxor.u32 %v656, 2147483648
  %v661 = vmul.f32 %v659, 1.442695
  %v662 = vpow.pop %v661
  %v663 = vmul.f32 %v660, 1.442695
  %v664 = vpow.pop %v663
  %v665 = vadd.f32 %v662, 1.0
  %v666 = vadd.f32 %v664, 1.0
  %v667 = vrcp.pop %v665
  %v668 = vmul.f32 %v665, %v667
  %v669 = vsub.f32 1.0, %v668
  %v670 = vmul.f32 %v667, %v669
  %v671 = vadd.f32 %v667, %v670
  %vm672 = vweird.f32 %v665
  %vm673 = vweird.f32 %v667
  %vm674 = vmor %vm672, %vm673
  %v675 = vsel %vm674, %v667, %v671
  %v676 = vand.u32 2147483647, %v665
  %vm677 = vcmp.eq.f32.partialorder %v676, 8.507059e+37
  %v678 = vand.u32 %v665, 2147483648
  %v679 = vor.u32 1.1754944e-38, %v678
  %v680 = vsel %vm677, %v679, %v675
  %v681 = vmul.f32 1.0, %v680
  %v682 = vrcp.pop %v666
  %v683 = vmul.f32 %v666, %v682
  %v684 = vsub.f32 1.0, %v683
  %v685 = vmul.f32 %v682, %v684
  %v686 = vadd.f32 %v682, %v685
  %vm687 = vweird.f32 %v666
  %vm688 = vweird.f32 %v682
  %vm689 = vmor %vm687, %vm688
  %v690 = vsel %vm689, %v682, %v686
  %v691 = vand.u32 2147483647, %v666
  %vm692 = vcmp.eq.f32.partialorder %v691, 8.507059e+37
  %v693 = vand.u32 %v666, 2147483648
  %v694 = vor.u32 1.1754944e-38, %v693
  %v695 = vsel %vm692, %v694, %v690
  %v696 = vmul.f32 1.0, %v695
  %v697 = vsel %vm62, %v657, %v681
  %v698 = vsel %vm63, %v658, %v696
  %v699 = vmul.f32 %v697, %v607
  %v700 = vmul.f32 %v697, %v698
  %702 = vrot.lane.b32.xlu0 %v700, 64
  %v703 = vpop.permute.xlu0 %702
  %v705 = vadd.f32 %v699, %v703
  %v706 = vtanh.pop %v705
  %v707 = vmul.f32 %v698, %v706
  %709 = vrot.lane.b32.xlu0 %v707, 64
  %v710 = vpop.permute.xlu0 %709
  %v711 = vsel %vm97, %v710, 0
  %713 = vmatpush.msra.mxu0 0.0
  %714 = vmatpush.msra.mxu0 0.0
  %715 = vmatpush.msra.mxu0 0.0
  %716 = vmatpush.msra.mxu0 0.0
  %717 = vmatpush.msra.mxu0 0.0
  %718 = vmatpush.msra.mxu0 0.0
  %719 = vmatpush.msra.mxu0 0.0
  %720 = vmatpush.msra.mxu0 0.0
  %721 = vmatpush.msra.mxu0 %v218
  %722 = vmatpush.msra.mxu0 %v216
  %723 = vmatpush.msra.mxu0 %v214
  %724 = vmatpush.msra.mxu0 %v212
  %725 = vmatpush.msra.mxu0 %v210
  %726 = vmatpush.msra.mxu0 %v208
  %727 = vmatpush.msra.mxu0 %v206
  %728 = vmatpush.msra.mxu0 %v204
  %729 = vmatmul.f32.gmra.mxu0 %v711
  %v730 = vpop.f32.mrf.mxu0
  %v731 = vadd.f32 0.0, %v730
  %732 = vdwg.mxu0
  %733 = vmatpush.msra.mxu0 0.0
  %734 = vmatpush.msra.mxu0 0.0
  %735 = vmatpush.msra.mxu0 0.0
  %736 = vmatpush.msra.mxu0 0.0
  %737 = vmatpush.msra.mxu0 0.0
  %738 = vmatpush.msra.mxu0 0.0
  %739 = vmatpush.msra.mxu0 0.0
  %740 = vmatpush.msra.mxu0 0.0
  %741 = vmatpush.msra.mxu0 %v219
  %742 = vmatpush.msra.mxu0 %v217
  %743 = vmatpush.msra.mxu0 %v215
  %744 = vmatpush.msra.mxu0 %v213
  %745 = vmatpush.msra.mxu0 %v211
  %746 = vmatpush.msra.mxu0 %v209
  %747 = vmatpush.msra.mxu0 %v207
  %748 = vmatpush.msra.mxu0 %v205
  %749 = vmatmul.f32.gmra.mxu0 %v711
  %v750 = vpop.f32.mrf.mxu0
  %v751 = vadd.f32 0.0, %v750
  %752 = vdwg.mxu0
  %v753 = vadd.f32 %v155, %v731
  %v754 = vadd.f32 %v196, %v751
  %v755 = vtanh.pop %v753
  %v756 = vtanh.pop %v754
  %v757 = vxor.u32 %v753, 2147483648
  %v758 = vxor.u32 %v754, 2147483648
  %v759 = vmul.f32 %v757, 1.442695
  %v760 = vpow.pop %v759
  %v761 = vmul.f32 %v758, 1.442695
  %v762 = vpow.pop %v761
  %v763 = vadd.f32 %v760, 1.0
  %v764 = vadd.f32 %v762, 1.0
  %v765 = vrcp.pop %v763
  %v766 = vmul.f32 %v763, %v765
  %v767 = vsub.f32 1.0, %v766
  %v768 = vmul.f32 %v765, %v767
  %v769 = vadd.f32 %v765, %v768
  %vm770 = vweird.f32 %v763
  %vm771 = vweird.f32 %v765
  %vm772 = vmor %vm770, %vm771
  %v773 = vsel %vm772, %v765, %v769
  %v774 = vand.u32 2147483647, %v763
  %vm775 = vcmp.eq.f32.partialorder %v774, 8.507059e+37
  %v776 = vand.u32 %v763, 2147483648
  %v777 = vor.u32 1.1754944e-38, %v776
  %v778 = vsel %vm775, %v777, %v773
  %v779 = vmul.f32 1.0, %v778
  %v780 = vrcp.pop %v764
  %v781 = vmul.f32 %v764, %v780
  %v782 = vsub.f32 1.0, %v781
  %v783 = vmul.f32 %v780, %v782
  %v784 = vadd.f32 %v780, %v783
  %vm785 = vweird.f32 %v764
  %vm786 = vweird.f32 %v780
  %vm787 = vmor %vm785, %vm786
  %v788 = vsel %vm787, %v780, %v784
  %v789 = vand.u32 2147483647, %v764
  %vm790 = vcmp.eq.f32.partialorder %v789, 8.507059e+37
  %v791 = vand.u32 %v764, 2147483648
  %v792 = vor.u32 1.1754944e-38, %v791
  %v793 = vsel %vm790, %v792, %v788
  %v794 = vmul.f32 1.0, %v793
  %v795 = vsel %vm62, %v755, %v779
  %v796 = vsel %vm63, %v756, %v794
  %v797 = vmul.f32 %v795, %v705
  %v798 = vmul.f32 %v795, %v796
  %800 = vrot.lane.b32.xlu0 %v798, 64
  %v801 = vpop.permute.xlu0 %800
  %v803 = vadd.f32 %v797, %v801
  %v804 = vtanh.pop %v803
  %v805 = vmul.f32 %v796, %v804
  %807 = vrot.lane.b32.xlu0 %v805, 64
  %v808 = vpop.permute.xlu0 %807
  %v809 = vsel %vm97, %v808, 0
  %811 = vmatpush.msra.mxu0 0.0
  %812 = vmatpush.msra.mxu0 0.0
  %813 = vmatpush.msra.mxu0 0.0
  %814 = vmatpush.msra.mxu0 0.0
  %815 = vmatpush.msra.mxu0 0.0
  %816 = vmatpush.msra.mxu0 0.0
  %817 = vmatpush.msra.mxu0 0.0
  %818 = vmatpush.msra.mxu0 0.0
  %819 = vmatpush.msra.mxu0 %v218
  %820 = vmatpush.msra.mxu0 %v216
  %821 = vmatpush.msra.mxu0 %v214
  %822 = vmatpush.msra.mxu0 %v212
  %823 = vmatpush.msra.mxu0 %v210
  %824 = vmatpush.msra.mxu0 %v208
  %825 = vmatpush.msra.mxu0 %v206
  %826 = vmatpush.msra.mxu0 %v204
  %827 = vmatmul.f32.gmra.mxu0 %v809
  %v828 = vpop.f32.mrf.mxu0
  %v829 = vadd.f32 0.0, %v828
  %830 = vdwg.mxu0
  %831 = vmatpush.msra.mxu0 0.0
  %832 = vmatpush.msra.mxu0 0.0
  %833 = vmatpush.msra.mxu0 0.0
  %834 = vmatpush.msra.mxu0 0.0
  %835 = vmatpush.msra.mxu0 0.0
  %836 = vmatpush.msra.mxu0 0.0
  %837 = vmatpush.msra.mxu0 0.0
  %838 = vmatpush.msra.mxu0 0.0
  %839 = vmatpush.msra.mxu0 %v219
  %840 = vmatpush.msra.mxu0 %v217
  %841 = vmatpush.msra.mxu0 %v215
  %842 = vmatpush.msra.mxu0 %v213
  %843 = vmatpush.msra.mxu0 %v211
  %844 = vmatpush.msra.mxu0 %v209
  %845 = vmatpush.msra.mxu0 %v207
  %846 = vmatpush.msra.mxu0 %v205
  %847 = vmatmul.f32.gmra.mxu0 %v809
  %v848 = vpop.f32.mrf.mxu0
  %v849 = vadd.f32 0.0, %v848
  %850 = vdwg.mxu0
  %v851 = vadd.f32 %v158, %v829
  %v852 = vadd.f32 %v199, %v849
  %v853 = vtanh.pop %v851
  %v854 = vtanh.pop %v852
  %v855 = vxor.u32 %v851, 2147483648
  %v856 = vxor.u32 %v852, 2147483648
  %v857 = vmul.f32 %v855, 1.442695
  %v858 = vpow.pop %v857
  %v859 = vmul.f32 %v856, 1.442695
  %v860 = vpow.pop %v859
  %v861 = vadd.f32 %v858, 1.0
  %v862 = vadd.f32 %v860, 1.0
  %v863 = vrcp.pop %v861
  %v864 = vmul.f32 %v861, %v863
  %v865 = vsub.f32 1.0, %v864
  %v866 = vmul.f32 %v863, %v865
  %v867 = vadd.f32 %v863, %v866
  %vm868 = vweird.f32 %v861
  %vm869 = vweird.f32 %v863
  %vm870 = vmor %vm868, %vm869
  %v871 = vsel %vm870, %v863, %v867
  %v872 = vand.u32 2147483647, %v861
  %vm873 = vcmp.eq.f32.partialorder %v872, 8.507059e+37
  %v874 = vand.u32 %v861, 2147483648
  %v875 = vor.u32 1.1754944e-38, %v874
  %v876 = vsel %vm873, %v875, %v871
  %v877 = vmul.f32 1.0, %v876
  %v878 = vrcp.pop %v862
  %v879 = vmul.f32 %v862, %v878
  %v880 = vsub.f32 1.0, %v879
  %v881 = vmul.f32 %v878, %v880
  %v882 = vadd.f32 %v878, %v881
  %vm883 = vweird.f32 %v862
  %vm884 = vweird.f32 %v878
  %vm885 = vmor %vm883, %vm884
  %v886 = vsel %vm885, %v878, %v882
  %v887 = vand.u32 2147483647, %v862
  %vm888 = vcmp.eq.f32.partialorder %v887, 8.507059e+37
  %v889 = vand.u32 %v862, 2147483648
  %v890 = vor.u32 1.1754944e-38, %v889
  %v891 = vsel %vm888, %v890, %v886
  %v892 = vmul.f32 1.0, %v891
  %v893 = vsel %vm62, %v853, %v877
  %v894 = vsel %vm63, %v854, %v892
  %v895 = vmul.f32 %v893, %v803
  %v896 = vmul.f32 %v893, %v894
  %898 = vrot.lane.b32.xlu0 %v896, 64
  %v899 = vpop.permute.xlu0 %898
  %v901 = vadd.f32 %v895, %v899
  %v902 = vtanh.pop %v901
  %v903 = vmul.f32 %v894, %v902
  %905 = vrot.lane.b32.xlu0 %v903, 64
  %v906 = vpop.permute.xlu0 %905
  %v907 = vsel %vm97, %v906, 0
  %909 = vmatpush.msra.mxu0 0.0
  %910 = vmatpush.msra.mxu0 0.0
  %911 = vmatpush.msra.mxu0 0.0
  %912 = vmatpush.msra.mxu0 0.0
  %913 = vmatpush.msra.mxu0 0.0
  %914 = vmatpush.msra.mxu0 0.0
  %915 = vmatpush.msra.mxu0 0.0
  %916 = vmatpush.msra.mxu0 0.0
  %917 = vmatpush.msra.mxu0 %v218
  %918 = vmatpush.msra.mxu0 %v216
  %919 = vmatpush.msra.mxu0 %v214
  %920 = vmatpush.msra.mxu0 %v212
  %921 = vmatpush.msra.mxu0 %v210
  %922 = vmatpush.msra.mxu0 %v208
  %923 = vmatpush.msra.mxu0 %v206
  %924 = vmatpush.msra.mxu0 %v204
  %925 = vmatmul.f32.gmra.mxu0 %v907
  %v926 = vpop.f32.mrf.mxu0
  %v927 = vadd.f32 0.0, %v926
  %928 = vdwg.mxu0
  %929 = vmatpush.msra.mxu0 0.0
  %930 = vmatpush.msra.mxu0 0.0
  %931 = vmatpush.msra.mxu0 0.0
  %932 = vmatpush.msra.mxu0 0.0
  %933 = vmatpush.msra.mxu0 0.0
  %934 = vmatpush.msra.mxu0 0.0
  %935 = vmatpush.msra.mxu0 0.0
  %936 = vmatpush.msra.mxu0 0.0
  %937 = vmatpush.msra.mxu0 %v219
  %938 = vmatpush.msra.mxu0 %v217
  %939 = vmatpush.msra.mxu0 %v215
  %940 = vmatpush.msra.mxu0 %v213
  %941 = vmatpush.msra.mxu0 %v211
  %942 = vmatpush.msra.mxu0 %v209
  %943 = vmatpush.msra.mxu0 %v207
  %944 = vmatpush.msra.mxu0 %v205
  %945 = vmatmul.f32.gmra.mxu0 %v907
  %v946 = vpop.f32.mrf.mxu0
  %v947 = vadd.f32 0.0, %v946
  %948 = vdwg.mxu0
  %v949 = vadd.f32 %v161, %v927
  %v950 = vadd.f32 %v202, %v947
  %v951 = vtanh.pop %v949
  %v952 = vtanh.pop %v950
  %v953 = vxor.u32 %v949, 2147483648
  %v954 = vxor.u32 %v950, 2147483648
  %v955 = vmul.f32 %v953, 1.442695
  %v956 = vpow.pop %v955
  %v957 = vmul.f32 %v954, 1.442695
  %v958 = vpow.pop %v957
  %v959 = vadd.f32 %v956, 1.0
  %v960 = vadd.f32 %v958, 1.0
  %v961 = vrcp.pop %v959
  %v962 = vmul.f32 %v959, %v961
  %v963 = vsub.f32 1.0, %v962
  %v964 = vmul.f32 %v961, %v963
  %v965 = vadd.f32 %v961, %v964
  %vm966 = vweird.f32 %v959
  %vm967 = vweird.f32 %v961
  %vm968 = vmor %vm966, %vm967
  %v969 = vsel %vm968, %v961, %v965
  %v970 = vand.u32 2147483647, %v959
  %vm971 = vcmp.eq.f32.partialorder %v970, 8.507059e+37
  %v972 = vand.u32 %v959, 2147483648
  %v973 = vor.u32 1.1754944e-38, %v972
  %v974 = vsel %vm971, %v973, %v969
  %v975 = vmul.f32 1.0, %v974
  %v976 = vrcp.pop %v960
  %v977 = vmul.f32 %v960, %v976
  %v978 = vsub.f32 1.0, %v977
  %v979 = vmul.f32 %v976, %v978
  %v980 = vadd.f32 %v976, %v979
  %vm981 = vweird.f32 %v960
  %vm982 = vweird.f32 %v976
  %vm983 = vmor %vm981, %vm982
  %v984 = vsel %vm983, %v976, %v980
  %v985 = vand.u32 2147483647, %v960
  %vm986 = vcmp.eq.f32.partialorder %v985, 8.507059e+37
  %v987 = vand.u32 %v960, 2147483648
  %v988 = vor.u32 1.1754944e-38, %v987
  %v989 = vsel %vm986, %v988, %v984
  %v990 = vmul.f32 1.0, %v989
  %v991 = vsel %vm62, %v951, %v975
  %v992 = vsel %vm63, %v952, %v990
  %v993 = vmul.f32 %v991, %v901
  %v994 = vmul.f32 %v991, %v992
  %996 = vrot.lane.b32.xlu0 %v994, 64
  %v997 = vpop.permute.xlu0 %996
  %v999 = vadd.f32 %v993, %v997
  %v1000 = vtanh.pop %v999
  %v1001 = vmul.f32 %v992, %v1000
  %v1002 = vld [vmem:[%s6] sm:$0xff]
  %v1003 = vld [vmem:[%s6 + $0x8] sm:$0xff]
  %v1004 = vld [vmem:[%s6 + $0x10] sm:$0xff]
  %v1005 = vld [vmem:[%s6 + $0x18] sm:$0xff]
  %v1006 = vld [vmem:[%s6 + $0x20] sm:$0xff]
  %v1007 = vld [vmem:[%s6 + $0x28] sm:$0xff]
  %v1008 = vld [vmem:[%s6 + $0x30] sm:$0xff]
  %v1009 = vld [vmem:[%s6 + $0x38] sm:$0xff]
  %v1010 = vld [vmem:[%s7] sm:$0x1]
  %v1012 = vperm.slane %v1010, 0
  %1015 = vrot.lane.b32.xlu0 %v1001, 64
  %v1016 = vpop.permute.xlu0 %1015
  %v1017 = vsel %vm97, %v1016, 0
  %1019 = vmatpush.msra.mxu0 0.0
  %1020 = vmatpush.msra.mxu0 0.0
  %1021 = vmatpush.msra.mxu0 0.0
  %1022 = vmatpush.msra.mxu0 0.0
  %1023 = vmatpush.msra.mxu0 0.0
  %1024 = vmatpush.msra.mxu0 0.0
  %1025 = vmatpush.msra.mxu0 0.0
  %1026 = vmatpush.msra.mxu0 0.0
  %1027 = vmatpush.msra.mxu0 %v1009
  %1028 = vmatpush.msra.mxu0 %v1008
  %1029 = vmatpush.msra.mxu0 %v1007
  %1030 = vmatpush.msra.mxu0 %v1006
  %1031 = vmatpush.msra.mxu0 %v1005
  %1032 = vmatpush.msra.mxu0 %v1004
  %1033 = vmatpush.msra.mxu0 %v1003
  %1034 = vmatpush.msra.mxu0 %v1002
  %1035 = vmatmul.f32.gmra.mxu0 %v1017
  %v1036 = vpop.f32.mrf.mxu0
  %v1037 = vadd.f32 %v1012, %v1036
  %1038 = vdwg.mxu0
  %1039 = vst [vmem:[%s16] sm:$0xff] %v1037
  %v1040 = vld [vmem:[%s2] sm:$0xff]
  %v1041 = vmul.f32 %v1037, 0.5
  %v1042 = vmul.f32 %v1041, 1.442695
  %v1043 = vpow.pop %v1042
  %1045 = vrot.lane.b32.xlu0 %v1043, 112
  %v1046 = vpop.permute.xlu0 %1045
  %v1048 = vmul.f32 %v1040, %v1046
  %v1049 = vadd.f32 %v1037, %v1048
  %v1050 = vld [vmem:[%s8] sm:$0xff]
  %v1051 = vld [vmem:[%s8 + $0x8] sm:$0xff]
  %v1052 = vld [vmem:[%s9] sm:$0x1]
  %v1054 = vperm.slane %v1052, 0
  %vm1056 = vcmask 130048
  %v1058 = vsel %vm1056, %v1049, 0
  %1060 = vmatpush.msra.mxu0 0.0
  %1061 = vmatpush.msra.mxu0 0.0
  %1062 = vmatpush.msra.mxu0 0.0
  %1063 = vmatpush.msra.mxu0 0.0
  %1064 = vmatpush.msra.mxu0 0.0
  %1065 = vmatpush.msra.mxu0 0.0
  %1066 = vmatpush.msra.mxu0 0.0
  %1067 = vmatpush.msra.mxu0 0.0
  %1068 = vmatpush.msra.mxu0 0.0
  %1069 = vmatpush.msra.mxu0 0.0
  %1070 = vmatpush.msra.mxu0 0.0
  %1071 = vmatpush.msra.mxu0 0.0
  %1072 = vmatpush.msra.mxu0 0.0
  %1073 = vmatpush.msra.mxu0 0.0
  %1074 = vmatpush.msra.mxu0 %v1051
  %1075 = vmatpush.msra.mxu0 %v1050
  %1076 = vmatmul.f32.gmra.mxu0 %v1058
  %v1077 = vpop.f32.mrf.mxu0
  %v1078 = vadd.f32 %v1054, %v1077
  %1079 = vdwg.mxu0
  %v1080 = vld [vmem:[%s1] sm:$0xff]
  %v1081 = vld [vmem:[%s1 + $0x8] sm:$0xff]
  %v1082 = vld [vmem:[%s1 + $0x10] sm:$0xff]
  %v1083 = vld [vmem:[%s1 + $0x18] sm:$0xff]
  %v1084 = vld [vmem:[%s1 + $0x20] sm:$0xff]
  %v1085 = vld [vmem:[%s1 + $0x28] sm:$0xff]
  %v1086 = vld [vmem:[%s1 + $0x30] sm:$0xff]
  %v1087 = vld [vmem:[%s1 + $0x38] sm:$0xff]
  %v1088 = vld [vmem:[%s10] sm:$0xff]
  %v1089 = vld [vmem:[%s10 + $0x8] sm:$0xff]
  %v1090 = vld [vmem:[%s10 + $0x10] sm:$0xff]
  %v1091 = vld [vmem:[%s10 + $0x18] sm:$0xff]
  %vm1092 = vcmask 261120
  %v1094 = vsel %vm1092, %v1080, 0
  %v1097 = vsel %vm1092, %v1081, 0
  %v1100 = vsel %vm1092, %v1082, 0
  %v1103 = vsel %vm1092, %v1083, 0
  %v1106 = vsel %vm1092, %v1084, 0
  %v1109 = vsel %vm1092, %v1085, 0
  %v1112 = vsel %vm1092, %v1086, 0
  %v1115 = vsel %vm1092, %v1087, 0
  %1117 = vmatpush.msra.mxu0 0.0
  %1118 = vmatpush.msra.mxu0 0.0
  %1119 = vmatpush.msra.mxu0 0.0
  %1120 = vmatpush.msra.mxu0 0.0
  %1121 = vmatpush.msra.mxu0 0.0
  %1122 = vmatpush.msra.mxu0 0.0
  %1123 = vmatpush.msra.mxu0 0.0
  %1124 = vmatpush.msra.mxu0 0.0
  %1125 = vmatpush.msra.mxu0 0.0
  %1126 = vmatpush.msra.mxu0 0.0
  %1127 = vmatpush.msra.mxu0 0.0
  %1128 = vmatpush.msra.mxu0 0.0
  %1129 = vmatpush.msra.mxu0 %v1091
  %1130 = vmatpush.msra.mxu0 %v1090
  %1131 = vmatpush.msra.mxu0 %v1089
  %1132 = vmatpush.msra.mxu0 %v1088
  %1133 = vmatmul.f32.gmra.mxu0 %v1094
  %v1134 = vpop.f32.mrf.mxu0
  %v1135 = vadd.f32 0.0, %v1134
  %1136 = vmatmul.f32.gmra.mxu0 %v1097
  %v1137 = vpop.f32.mrf.mxu0
  %v1138 = vadd.f32 0.0, %v1137
  %1139 = vmatmul.f32.gmra.mxu0 %v1100
  %v1140 = vpop.f32.mrf.mxu0
  %v1141 = vadd.f32 0.0, %v1140
  %1142 = vmatmul.f32.gmra.mxu0 %v1103
  %v1143 = vpop.f32.mrf.mxu0
  %v1144 = vadd.f32 0.0, %v1143
  %1145 = vmatmul.f32.gmra.mxu0 %v1106
  %v1146 = vpop.f32.mrf.mxu0
  %v1147 = vadd.f32 0.0, %v1146
  %1148 = vmatmul.f32.gmra.mxu0 %v1109
  %v1149 = vpop.f32.mrf.mxu0
  %v1150 = vadd.f32 0.0, %v1149
  %1151 = vmatmul.f32.gmra.mxu0 %v1112
  %v1152 = vpop.f32.mrf.mxu0
  %v1153 = vadd.f32 0.0, %v1152
  %1154 = vmatmul.f32.gmra.mxu0 %v1115
  %v1155 = vpop.f32.mrf.mxu0
  %v1156 = vadd.f32 0.0, %v1155
  %1157 = vdwg.mxu0
  %v1158 = vld [vmem:[%s11] sm:$0xff]
  %v1159 = vld [vmem:[%s11 + $0x8] sm:$0xff]
  %v1160 = vld [vmem:[%s13] sm:$0x1]
  %v1162 = vperm.slane %v1160, 0
  %1164 = vmatpush.msra.mxu0 0.0
  %1165 = vmatpush.msra.mxu0 0.0
  %1166 = vmatpush.msra.mxu0 0.0
  %1167 = vmatpush.msra.mxu0 0.0
  %1168 = vmatpush.msra.mxu0 0.0
  %1169 = vmatpush.msra.mxu0 0.0
  %1170 = vmatpush.msra.mxu0 0.0
  %1171 = vmatpush.msra.mxu0 0.0
  %1172 = vmatpush.msra.mxu0 0.0
  %1173 = vmatpush.msra.mxu0 0.0
  %1174 = vmatpush.msra.mxu0 0.0
  %1175 = vmatpush.msra.mxu0 0.0
  %1176 = vmatpush.msra.mxu0 0.0
  %1177 = vmatpush.msra.mxu0 0.0
  %1178 = vmatpush.msra.mxu0 %v1159
  %1179 = vmatpush.msra.mxu0 %v1158
  %1180 = vmatmul.f32.gmra.mxu0 %v1058
  %v1181 = vpop.f32.mrf.mxu0
  %v1182 = vadd.f32 %v1162, %v1181
  %1183 = vdwg.mxu0
  %v1184 = vld [vmem:[%s12] sm:$0xff]
  %v1185 = vld [vmem:[%s12 + $0x8] sm:$0xff]
  %v1186 = vld [vmem:[%s12 + $0x10] sm:$0xff]
  %v1187 = vld [vmem:[%s12 + $0x18] sm:$0xff]
  %v1188 = vadd.f32 %v1135, %v1182
  %v1190 = vsel %vm1092, %v1078, 0
  %1192 = vmatpush.msra.mxu0 0.0
  %1193 = vmatpush.msra.mxu0 0.0
  %1194 = vmatpush.msra.mxu0 0.0
  %1195 = vmatpush.msra.mxu0 0.0
  %1196 = vmatpush.msra.mxu0 0.0
  %1197 = vmatpush.msra.mxu0 0.0
  %1198 = vmatpush.msra.mxu0 0.0
  %1199 = vmatpush.msra.mxu0 0.0
  %1200 = vmatpush.msra.mxu0 0.0
  %1201 = vmatpush.msra.mxu0 0.0
  %1202 = vmatpush.msra.mxu0 0.0
  %1203 = vmatpush.msra.mxu0 0.0
  %1204 = vmatpush.msra.mxu0 %v1187
  %1205 = vmatpush.msra.mxu0 %v1186
  %1206 = vmatpush.msra.mxu0 %v1185
  %1207 = vmatpush.msra.mxu0 %v1184
  %1208 = vmatmul.f32.gmra.mxu0 %v1190
  %v1209 = vpop.f32.mrf.mxu0
  %v1210 = vadd.f32 0.0, %v1209
  %1211 = vdwg.mxu0
  %v1212 = vadd.f32 %v1188, %v1210
  %v1213 = vtanh.pop %v1212
  %v1214 = vxor.u32 %v1212, 2147483648
  %v1215 = vmul.f32 %v1214, 1.442695
  %v1216 = vpow.pop %v1215
  %v1217 = vadd.f32 %v1216, 1.0
  %v1218 = vrcp.pop %v1217
  %v1219 = vmul.f32 %v1217, %v1218
  %v1220 = vsub.f32 1.0, %v1219
  %v1221 = vmul.f32 %v1218, %v1220
  %v1222 = vadd.f32 %v1218, %v1221
  %vm1223 = vweird.f32 %v1217
  %vm1224 = vweird.f32 %v1218
  %vm1225 = vmor %vm1223, %vm1224
  %v1226 = vsel %vm1225, %v1218, %v1222
  %v1227 = vand.u32 2147483647, %v1217
  %vm1228 = vcmp.eq.f32.partialorder %v1227, 8.507059e+37
  %v1229 = vand.u32 %v1217, 2147483648
  %v1230 = vor.u32 1.1754944e-38, %v1229
  %v1231 = vsel %vm1228, %v1230, %v1226
  %v1232 = vmul.f32 1.0, %v1231
  %v1233 = vsel %vm66, %v1213, %v1232
  %v1234 = vmul.f32 %v1233, %v1078
  %1236 = vrot.lane.b32.xlu0 %v1233, 64
  %v1237 = vpop.permute.xlu0 %1236
  %v1239 = vmul.f32 %v1233, %v1237
  %1241 = vrot.lane.b32.xlu0 %v1239, 32
  %v1242 = vpop.permute.xlu0 %1241
  %v1244 = vadd.f32 %v1234, %v1242
  %v1245 = vtanh.pop %v1244
  %1247 = vrot.lane.b32.xlu0 %v1245, 64
  %v1248 = vpop.permute.xlu0 %1247
  %v1250 = vmul.f32 %v1233, %v1248
  %1252 = vrot.lane.b32.xlu0 %v1250, 32
  %v1253 = vpop.permute.xlu0 %1252
  %1255 = vst.msk [vmem:[#allocation2] sm:$0xff] %vm1092, %v1253
  %v1256 = vadd.f32 %v1138, %v1182
  %v1257 = vsel %vm1092, %v1253, 0
  %1259 = vmatpush.msra.mxu0 0.0
  %1260 = vmatpush.msra.mxu0 0.0
  %1261 = vmatpush.msra.mxu0 0.0
  %1262 = vmatpush.msra.mxu0 0.0
  %1263 = vmatpush.msra.mxu0 0.0
  %1264 = vmatpush.msra.mxu0 0.0
  %1265 = vmatpush.msra.mxu0 0.0
  %1266 = vmatpush.msra.mxu0 0.0
  %1267 = vmatpush.msra.mxu0 0.0
  %1268 = vmatpush.msra.mxu0 0.0
  %1269 = vmatpush.msra.mxu0 0.0
  %1270 = vmatpush.msra.mxu0 0.0
  %1271 = vmatpush.msra.mxu0 %v1187
  %1272 = vmatpush.msra.mxu0 %v1186
  %1273 = vmatpush.msra.mxu0 %v1185
  %1274 = vmatpush.msra.mxu0 %v1184
  %1275 = vmatmul.f32.gmra.mxu0 %v1257
  %v1276 = vpop.f32.mrf.mxu0
  %v1277 = vadd.f32 0.0, %v1276
  %1278 = vdwg.mxu0
  %v1279 = vadd.f32 %v1256, %v1277
  %v1280 = vtanh.pop %v1279
  %v1281 = vxor.u32 %v1279, 2147483648
  %v1282 = vmul.f32 %v1281, 1.442695
  %v1283 = vpow.pop %v1282
  %v1284 = vadd.f32 %v1283, 1.0
  %v1285 = vrcp.pop %v1284
  %v1286 = vmul.f32 %v1284, %v1285
  %v1287 = vsub.f32 1.0, %v1286
  %v1288 = vmul.f32 %v1285, %v1287
  %v1289 = vadd.f32 %v1285, %v1288
  %vm1290 = vweird.f32 %v1284
  %vm1291 = vweird.f32 %v1285
  %vm1292 = vmor %vm1290, %vm1291
  %v1293 = vsel %vm1292, %v1285, %v1289
  %v1294 = vand.u32 2147483647, %v1284
  %vm1295 = vcmp.eq.f32.partialorder %v1294, 8.507059e+37
  %v1296 = vand.u32 %v1284, 2147483648
  %v1297 = vor.u32 1.1754944e-38, %v1296
  %v1298 = vsel %vm1295, %v1297, %v1293
  %v1299 = vmul.f32 1.0, %v1298
  %v1300 = vsel %vm66, %v1280, %v1299
  %v1301 = vmul.f32 %v1300, %v1244
  %1303 = vrot.lane.b32.xlu0 %v1300, 64
  %v1304 = vpop.permute.xlu0 %1303
  %v1306 = vmul.f32 %v1300, %v1304
  %1308 = vrot.lane.b32.xlu0 %v1306, 32
  %v1309 = vpop.permute.xlu0 %1308
  %v1311 = vadd.f32 %v1301, %v1309
  %v1312 = vtanh.pop %v1311
  %1314 = vrot.lane.b32.xlu0 %v1312, 64
  %v1315 = vpop.permute.xlu0 %1314
  %v1317 = vmul.f32 %v1300, %v1315
  %1319 = vrot.lane.b32.xlu0 %v1317, 32
  %v1320 = vpop.permute.xlu0 %1319
  %1322 = vst.msk [vmem:[#allocation2 + $0x8] sm:$0xff] %vm1092, %v1320
  %v1323 = vadd.f32 %v1141, %v1182
  %v1324 = vsel %vm1092, %v1320, 0
  %1326 = vmatpush.msra.mxu0 0.0
  %1327 = vmatpush.msra.mxu0 0.0
  %1328 = vmatpush.msra.mxu0 0.0
  %1329 = vmatpush.msra.mxu0 0.0
  %1330 = vmatpush.msra.mxu0 0.0
  %1331 = vmatpush.msra.mxu0 0.0
  %1332 = vmatpush.msra.mxu0 0.0
  %1333 = vmatpush.msra.mxu0 0.0
  %1334 = vmatpush.msra.mxu0 0.0
  %1335 = vmatpush.msra.mxu0 0.0
  %1336 = vmatpush.msra.mxu0 0.0
  %1337 = vmatpush.msra.mxu0 0.0
  %1338 = vmatpush.msra.mxu0 %v1187
  %1339 = vmatpush.msra.mxu0 %v1186
  %1340 = vmatpush.msra.mxu0 %v1185
  %1341 = vmatpush.msra.mxu0 %v1184
  %1342 = vmatmul.f32.gmra.mxu0 %v1324
  %v1343 = vpop.f32.mrf.mxu0
  %v1344 = vadd.f32 0.0, %v1343
  %1345 = vdwg.mxu0
  %v1346 = vadd.f32 %v1323, %v1344
  %v1347 = vtanh.pop %v1346
  %v1348 = vxor.u32 %v1346, 2147483648
  %v1349 = vmul.f32 %v1348, 1.442695
  %v1350 = vpow.pop %v1349
  %v1351 = vadd.f32 %v1350, 1.0
  %v1352 = vrcp.pop %v1351
  %v1353 = vmul.f32 %v1351, %v1352
  %v1354 = vsub.f32 1.0, %v1353
  %v1355 = vmul.f32 %v1352, %v1354
  %v1356 = vadd.f32 %v1352, %v1355
  %vm1357 = vweird.f32 %v1351
  %vm1358 = vweird.f32 %v1352
  %vm1359 = vmor %vm1357, %vm1358
  %v1360 = vsel %vm1359, %v1352, %v1356
  %v1361 = vand.u32 2147483647, %v1351
  %vm1362 = vcmp.eq.f32.partialorder %v1361, 8.507059e+37
  %v1363 = vand.u32 %v1351, 2147483648
  %v1364 = vor.u32 1.1754944e-38, %v1363
  %v1365 = vsel %vm1362, %v1364, %v1360
  %v1366 = vmul.f32 1.0, %v1365
  %v1367 = vsel %vm66, %v1347, %v1366
  %v1368 = vmul.f32 %v1367, %v1311
  %1370 = vrot.lane.b32.xlu0 %v1367, 64
  %v1371 = vpop.permute.xlu0 %1370
  %v1373 = vmul.f32 %v1367, %v1371
  %1375 = vrot.lane.b32.xlu0 %v1373, 32
  %v1376 = vpop.permute.xlu0 %1375
  %v1378 = vadd.f32 %v1368, %v1376
  %v1379 = vtanh.pop %v1378
  %1381 = vrot.lane.b32.xlu0 %v1379, 64
  %v1382 = vpop.permute.xlu0 %1381
  %v1384 = vmul.f32 %v1367, %v1382
  %1386 = vrot.lane.b32.xlu0 %v1384, 32
  %v1387 = vpop.permute.xlu0 %1386
  %1389 = vst.msk [vmem:[#allocation2 + $0x10] sm:$0xff] %vm1092, %v1387
  %v1390 = vadd.f32 %v1144, %v1182
  %v1391 = vsel %vm1092, %v1387, 0
  %1393 = vmatpush.msra.mxu0 0.0
  %1394 = vmatpush.msra.mxu0 0.0
  %1395 = vmatpush.msra.mxu0 0.0
  %1396 = vmatpush.msra.mxu0 0.0
  %1397 = vmatpush.msra.mxu0 0.0
  %1398 = vmatpush.msra.mxu0 0.0
  %1399 = vmatpush.msra.mxu0 0.0
  %1400 = vmatpush.msra.mxu0 0.0
  %1401 = vmatpush.msra.mxu0 0.0
  %1402 = vmatpush.msra.mxu0 0.0
  %1403 = vmatpush.msra.mxu0 0.0
  %1404 = vmatpush.msra.mxu0 0.0
  %1405 = vmatpush.msra.mxu0 %v1187
  %1406 = vmatpush.msra.mxu0 %v1186
  %1407 = vmatpush.msra.mxu0 %v1185
  %1408 = vmatpush.msra.mxu0 %v1184
  %1409 = vmatmul.f32.gmra.mxu0 %v1391
  %v1410 = vpop.f32.mrf.mxu0
  %v1411 = vadd.f32 0.0, %v1410
  %1412 = vdwg.mxu0
  %v1413 = vadd.f32 %v1390, %v1411
  %v1414 = vtanh.pop %v1413
  %v1415 = vxor.u32 %v1413, 2147483648
  %v1416 = vmul.f32 %v1415, 1.442695
  %v1417 = vpow.pop %v1416
  %v1418 = vadd.f32 %v1417, 1.0
  %v1419 = vrcp.pop %v1418
  %v1420 = vmul.f32 %v1418, %v1419
  %v1421 = vsub.f32 1.0, %v1420
  %v1422 = vmul.f32 %v1419, %v1421
  %v1423 = vadd.f32 %v1419, %v1422
  %vm1424 = vweird.f32 %v1418
  %vm1425 = vweird.f32 %v1419
  %vm1426 = vmor %vm1424, %vm1425
  %v1427 = vsel %vm1426, %v1419, %v1423
  %v1428 = vand.u32 2147483647, %v1418
  %vm1429 = vcmp.eq.f32.partialorder %v1428, 8.507059e+37
  %v1430 = vand.u32 %v1418, 2147483648
  %v1431 = vor.u32 1.1754944e-38, %v1430
  %v1432 = vsel %vm1429, %v1431, %v1427
  %v1433 = vmul.f32 1.0, %v1432
  %v1434 = vsel %vm66, %v1414, %v1433
  %v1435 = vmul.f32 %v1434, %v1378
  %1437 = vrot.lane.b32.xlu0 %v1434, 64
  %v1438 = vpop.permute.xlu0 %1437
  %v1440 = vmul.f32 %v1434, %v1438
  %1442 = vrot.lane.b32.xlu0 %v1440, 32
  %v1443 = vpop.permute.xlu0 %1442
  %v1445 = vadd.f32 %v1435, %v1443
  %v1446 = vtanh.pop %v1445
  %1448 = vrot.lane.b32.xlu0 %v1446, 64
  %v1449 = vpop.permute.xlu0 %1448
  %v1451 = vmul.f32 %v1434, %v1449
  %1453 = vrot.lane.b32.xlu0 %v1451, 32
  %v1454 = vpop.permute.xlu0 %1453
  %1456 = vst.msk [vmem:[#allocation2 + $0x18] sm:$0xff] %vm1092, %v1454
  %v1457 = vadd.f32 %v1147, %v1182
  %v1458 = vsel %vm1092, %v1454, 0
  %1460 = vmatpush.msra.mxu0 0.0
  %1461 = vmatpush.msra.mxu0 0.0
  %1462 = vmatpush.msra.mxu0 0.0
  %1463 = vmatpush.msra.mxu0 0.0
  %1464 = vmatpush.msra.mxu0 0.0
  %1465 = vmatpush.msra.mxu0 0.0
  %1466 = vmatpush.msra.mxu0 0.0
  %1467 = vmatpush.msra.mxu0 0.0
  %1468 = vmatpush.msra.mxu0 0.0
  %1469 = vmatpush.msra.mxu0 0.0
  %1470 = vmatpush.msra.mxu0 0.0
  %1471 = vmatpush.msra.mxu0 0.0
  %1472 = vmatpush.msra.mxu0 %v1187
  %1473 = vmatpush.msra.mxu0 %v1186
  %1474 = vmatpush.msra.mxu0 %v1185
  %1475 = vmatpush.msra.mxu0 %v1184
  %1476 = vmatmul.f32.gmra.mxu0 %v1458
  %v1477 = vpop.f32.mrf.mxu0
  %v1478 = vadd.f32 0.0, %v1477
  %1479 = vdwg.mxu0
  %v1480 = vadd.f32 %v1457, %v1478
  %v1481 = vtanh.pop %v1480
  %v1482 = vxor.u32 %v1480, 2147483648
  %v1483 = vmul.f32 %v1482, 1.442695
  %v1484 = vpow.pop %v1483
  %v1485 = vadd.f32 %v1484, 1.0
  %v1486 = vrcp.pop %v1485
  %v1487 = vmul.f32 %v1485, %v1486
  %v1488 = vsub.f32 1.0, %v1487
  %v1489 = vmul.f32 %v1486, %v1488
  %v1490 = vadd.f32 %v1486, %v1489
  %vm1491 = vweird.f32 %v1485
  %vm1492 = vweird.f32 %v1486
  %vm1493 = vmor %vm1491, %vm1492
  %v1494 = vsel %vm1493, %v1486, %v1490
  %v1495 = vand.u32 2147483647, %v1485
  %vm1496 = vcmp.eq.f32.partialorder %v1495, 8.507059e+37
  %v1497 = vand.u32 %v1485, 2147483648
  %v1498 = vor.u32 1.1754944e-38, %v1497
  %v1499 = vsel %vm1496, %v1498, %v1494
  %v1500 = vmul.f32 1.0, %v1499
  %v1501 = vsel %vm66, %v1481, %v1500
  %v1502 = vmul.f32 %v1501, %v1445
  %1504 = vrot.lane.b32.xlu0 %v1501, 64
  %v1505 = vpop.permute.xlu0 %1504
  %v1507 = vmul.f32 %v1501, %v1505
  %1509 = vrot.lane.b32.xlu0 %v1507, 32
  %v1510 = vpop.permute.xlu0 %1509
  %v1512 = vadd.f32 %v1502, %v1510
  %v1513 = vtanh.pop %v1512
  %1515 = vrot.lane.b32.xlu0 %v1513, 64
  %v1516 = vpop.permute.xlu0 %1515
  %v1518 = vmul.f32 %v1501, %v1516
  %1520 = vrot.lane.b32.xlu0 %v1518, 32
  %v1521 = vpop.permute.xlu0 %1520
  %1523 = vst.msk [vmem:[#allocation2 + $0x20] sm:$0xff] %vm1092, %v1521
  %v1524 = vadd.f32 %v1150, %v1182
  %v1525 = vsel %vm1092, %v1521, 0
  %1527 = vmatpush.msra.mxu0 0.0
  %1528 = vmatpush.msra.mxu0 0.0
  %1529 = vmatpush.msra.mxu0 0.0
  %1530 = vmatpush.msra.mxu0 0.0
  %1531 = vmatpush.msra.mxu0 0.0
  %1532 = vmatpush.msra.mxu0 0.0
  %1533 = vmatpush.msra.mxu0 0.0
  %1534 = vmatpush.msra.mxu0 0.0
  %1535 = vmatpush.msra.mxu0 0.0
  %1536 = vmatpush.msra.mxu0 0.0
  %1537 = vmatpush.msra.mxu0 0.0
  %1538 = vmatpush.msra.mxu0 0.0
  %1539 = vmatpush.msra.mxu0 %v1187
  %1540 = vmatpush.msra.mxu0 %v1186
  %1541 = vmatpush.msra.mxu0 %v1185
  %1542 = vmatpush.msra.mxu0 %v1184
  %1543 = vmatmul.f32.gmra.mxu0 %v1525
  %v1544 = vpop.f32.mrf.mxu0
  %v1545 = vadd.f32 0.0, %v1544
  %1546 = vdwg.mxu0
  %v1547 = vadd.f32 %v1524, %v1545
  %v1548 = vtanh.pop %v1547
  %v1549 = vxor.u32 %v1547, 2147483648
  %v1550 = vmul.f32 %v1549, 1.442695
  %v1551 = vpow.pop %v1550
  %v1552 = vadd.f32 %v1551, 1.0
  %v1553 = vrcp.pop %v1552
  %v1554 = vmul.f32 %v1552, %v1553
  %v1555 = vsub.f32 1.0, %v1554
  %v1556 = vmul.f32 %v1553, %v1555
  %v1557 = vadd.f32 %v1553, %v1556
  %vm1558 = vweird.f32 %v1552
  %vm1559 = vweird.f32 %v1553
  %vm1560 = vmor %vm1558, %vm1559
  %v1561 = vsel %vm1560, %v1553, %v1557
  %v1562 = vand.u32 2147483647, %v1552
  %vm1563 = vcmp.eq.f32.partialorder %v1562, 8.507059e+37
  %v1564 = vand.u32 %v1552, 2147483648
  %v1565 = vor.u32 1.1754944e-38, %v1564
  %v1566 = vsel %vm1563, %v1565, %v1561
  %v1567 = vmul.f32 1.0, %v1566
  %v1568 = vsel %vm66, %v1548, %v1567
  %v1569 = vmul.f32 %v1568, %v1512
  %1571 = vrot.lane.b32.xlu0 %v1568, 64
  %v1572 = vpop.permute.xlu0 %1571
  %v1574 = vmul.f32 %v1568, %v1572
  %1576 = vrot.lane.b32.xlu0 %v1574, 32
  %v1577 = vpop.permute.xlu0 %1576
  %v1579 = vadd.f32 %v1569, %v1577
  %v1580 = vtanh.pop %v1579
  %1582 = vrot.lane.b32.xlu0 %v1580, 64
  %v1583 = vpop.permute.xlu0 %1582
  %v1585 = vmul.f32 %v1568, %v1583
  %1587 = vrot.lane.b32.xlu0 %v1585, 32
  %v1588 = vpop.permute.xlu0 %1587
  %1590 = vst.msk [vmem:[#allocation2 + $0x28] sm:$0xff] %vm1092, %v1588
  %v1591 = vadd.f32 %v1153, %v1182
  %v1592 = vsel %vm1092, %v1588, 0
  %1594 = vmatpush.msra.mxu0 0.0
  %1595 = vmatpush.msra.mxu0 0.0
  %1596 = vmatpush.msra.mxu0 0.0
  %1597 = vmatpush.msra.mxu0 0.0
  %1598 = vmatpush.msra.mxu0 0.0
  %1599 = vmatpush.msra.mxu0 0.0
  %1600 = vmatpush.msra.mxu0 0.0
  %1601 = vmatpush.msra.mxu0 0.0
  %1602 = vmatpush.msra.mxu0 0.0
  %1603 = vmatpush.msra.mxu0 0.0
  %1604 = vmatpush.msra.mxu0 0.0
  %1605 = vmatpush.msra.mxu0 0.0
  %1606 = vmatpush.msra.mxu0 %v1187
  %1607 = vmatpush.msra.mxu0 %v1186
  %1608 = vmatpush.msra.mxu0 %v1185
  %1609 = vmatpush.msra.mxu0 %v1184
  %1610 = vmatmul.f32.gmra.mxu0 %v1592
  %v1611 = vpop.f32.mrf.mxu0
  %v1612 = vadd.f32 0.0, %v1611
  %1613 = vdwg.mxu0
  %v1614 = vadd.f32 %v1591, %v1612
  %v1615 = vtanh.pop %v1614
  %v1616 = vxor.u32 %v1614, 2147483648
  %v1617 = vmul.f32 %v1616, 1.442695
  %v1618 = vpow.pop %v1617
  %v1619 = vadd.f32 %v1618, 1.0
  %v1620 = vrcp.pop %v1619
  %v1621 = vmul.f32 %v1619, %v1620
  %v1622 = vsub.f32 1.0, %v1621
  %v1623 = vmul.f32 %v1620, %v1622
  %v1624 = vadd.f32 %v1620, %v1623
  %vm1625 = vweird.f32 %v1619
  %vm1626 = vweird.f32 %v1620
  %vm1627 = vmor %vm1625, %vm1626
  %v1628 = vsel %vm1627, %v1620, %v1624
  %v1629 = vand.u32 2147483647, %v1619
  %vm1630 = vcmp.eq.f32.partialorder %v1629, 8.507059e+37
  %v1631 = vand.u32 %v1619, 2147483648
  %v1632 = vor.u32 1.1754944e-38, %v1631
  %v1633 = vsel %vm1630, %v1632, %v1628
  %v1634 = vmul.f32 1.0, %v1633
  %v1635 = vsel %vm66, %v1615, %v1634
  %v1636 = vmul.f32 %v1635, %v1579
  %1638 = vrot.lane.b32.xlu0 %v1635, 64
  %v1639 = vpop.permute.xlu0 %1638
  %v1641 = vmul.f32 %v1635, %v1639
  %1643 = vrot.lane.b32.xlu0 %v1641, 32
  %v1644 = vpop.permute.xlu0 %1643
  %v1646 = vadd.f32 %v1636, %v1644
  %v1647 = vtanh.pop %v1646
  %1649 = vrot.lane.b32.xlu0 %v1647, 64
  %v1650 = vpop.permute.xlu0 %1649
  %v1652 = vmul.f32 %v1635, %v1650
  %1654 = vrot.lane.b32.xlu0 %v1652, 32
  %v1655 = vpop.permute.xlu0 %1654
  %1657 = vst.msk [vmem:[#allocation2 + $0x30] sm:$0xff] %vm1092, %v1655
  %v1658 = vadd.f32 %v1156, %v1182
  %v1659 = vsel %vm1092, %v1655, 0
  %1661 = vmatpush.msra.mxu0 0.0
  %1662 = vmatpush.msra.mxu0 0.0
  %1663 = vmatpush.msra.mxu0 0.0
  %1664 = vmatpush.msra.mxu0 0.0
  %1665 = vmatpush.msra.mxu0 0.0
  %1666 = vmatpush.msra.mxu0 0.0
  %1667 = vmatpush.msra.mxu0 0.0
  %1668 = vmatpush.msra.mxu0 0.0
  %1669 = vmatpush.msra.mxu0 0.0
  %1670 = vmatpush.msra.mxu0 0.0
  %1671 = vmatpush.msra.mxu0 0.0
  %1672 = vmatpush.msra.mxu0 0.0
  %1673 = vmatpush.msra.mxu0 %v1187
  %1674 = vmatpush.msra.mxu0 %v1186
  %1675 = vmatpush.msra.mxu0 %v1185
  %1676 = vmatpush.msra.mxu0 %v1184
  %1677 = vmatmul.f32.gmra.mxu0 %v1659
  %v1678 = vpop.f32.mrf.mxu0
  %v1679 = vadd.f32 0.0, %v1678
  %1680 = vdwg.mxu0
  %v1681 = vadd.f32 %v1658, %v1679
  %v1682 = vtanh.pop %v1681
  %v1683 = vxor.u32 %v1681, 2147483648
  %v1684 = vmul.f32 %v1683, 1.442695
  %v1685 = vpow.pop %v1684
  %v1686 = vadd.f32 %v1685, 1.0
  %v1687 = vrcp.pop %v1686
  %v1688 = vmul.f32 %v1686, %v1687
  %v1689 = vsub.f32 1.0, %v1688
  %v1690 = vmul.f32 %v1687, %v1689
  %v1691 = vadd.f32 %v1687, %v1690
  %vm1692 = vweird.f32 %v1686
  %vm1693 = vweird.f32 %v1687
  %vm1694 = vmor %vm1692, %vm1693
  %v1695 = vsel %vm1694, %v1687, %v1691
  %v1696 = vand.u32 2147483647, %v1686
  %vm1697 = vcmp.eq.f32.partialorder %v1696, 8.507059e+37
  %v1698 = vand.u32 %v1686, 2147483648
  %v1699 = vor.u32 1.1754944e-38, %v1698
  %v1700 = vsel %vm1697, %v1699, %v1695
  %v1701 = vmul.f32 1.0, %v1700
  %v1702 = vsel %vm66, %v1682, %v1701
  %v1703 = vmul.f32 %v1702, %v1646
  %1705 = vrot.lane.b32.xlu0 %v1702, 64
  %v1706 = vpop.permute.xlu0 %1705
  %v1708 = vmul.f32 %v1702, %v1706
  %1710 = vrot.lane.b32.xlu0 %v1708, 32
  %v1711 = vpop.permute.xlu0 %1710
  %v1713 = vadd.f32 %v1703, %v1711
  %v1714 = vtanh.pop %v1713
  %1716 = vrot.lane.b32.xlu0 %v1714, 64
  %v1717 = vpop.permute.xlu0 %1716
  %v1719 = vmul.f32 %v1702, %v1717
  %1721 = vrot.lane.b32.xlu0 %v1719, 32
  %v1722 = vpop.permute.xlu0 %1721
  %1724 = vst.msk [vmem:[#allocation2 + $0x38] sm:$0xff] %vm1092, %v1722
  %v1725 = vld [vmem:[#allocation2] sm:$0xff]
  %v1726 = vld [vmem:[#allocation2 + $0x8] sm:$0xff]
  %v1727 = vld [vmem:[#allocation2 + $0x10] sm:$0xff]
  %v1728 = vld [vmem:[#allocation2 + $0x18] sm:$0xff]
  %v1729 = vld [vmem:[#allocation2 + $0x20] sm:$0xff]
  %v1730 = vld [vmem:[#allocation2 + $0x28] sm:$0xff]
  %v1731 = vld [vmem:[#allocation2 + $0x30] sm:$0xff]
  %v1732 = vld [vmem:[#allocation2 + $0x38] sm:$0xff]
  %v1733 = vld [vmem:[%s14] sm:$0xff]
  %v1734 = vld [vmem:[%s14 + $0x8] sm:$0xff]
  %v1735 = vld [vmem:[%s14 + $0x10] sm:$0xff]
  %v1736 = vld [vmem:[%s14 + $0x18] sm:$0xff]
  %v1737 = vld [vmem:[%s15] sm:$0x1]
  %v1739 = vperm.slane %v1737, 0
  %v1742 = vsel %vm1092, %v1725, 0
  %v1745 = vsel %vm1092, %v1726, 0
  %v1748 = vsel %vm1092, %v1727, 0
  %v1751 = vsel %vm1092, %v1728, 0
  %v1754 = vsel %vm1092, %v1729, 0
  %v1757 = vsel %vm1092, %v1730, 0
  %v1760 = vsel %vm1092, %v1731, 0
  %v1763 = vsel %vm1092, %v1732, 0
  %1765 = vmatpush.msra.mxu0 0.0
  %1766 = vmatpush.msra.mxu0 0.0
  %1767 = vmatpush.msra.mxu0 0.0
  %1768 = vmatpush.msra.mxu0 0.0
  %1769 = vmatpush.msra.mxu0 0.0
  %1770 = vmatpush.msra.mxu0 0.0
  %1771 = vmatpush.msra.mxu0 0.0
  %1772 = vmatpush.msra.mxu0 0.0
  %1773 = vmatpush.msra.mxu0 0.0
  %1774 = vmatpush.msra.mxu0 0.0
  %1775 = vmatpush.msra.mxu0 0.0
  %1776 = vmatpush.msra.mxu0 0.0
  %1777 = vmatpush.msra.mxu0 %v1736
  %1778 = vmatpush.msra.mxu0 %v1735
  %1779 = vmatpush.msra.mxu0 %v1734
  %1780 = vmatpush.msra.mxu0 %v1733
  %1781 = vmatmul.f32.gmra.mxu0 %v1742
  %v1782 = vpop.f32.mrf.mxu0
  %v1783 = vadd.f32 %v1739, %v1782
  %1784 = vmatmul.f32.gmra.mxu0 %v1745
  %v1785 = vpop.f32.mrf.mxu0
  %v1786 = vadd.f32 %v1739, %v1785
  %1787 = vmatmul.f32.gmra.mxu0 %v1748
  %v1788 = vpop.f32.mrf.mxu0
  %v1789 = vadd.f32 %v1739, %v1788
  %1790 = vmatmul.f32.gmra.mxu0 %v1751
  %v1791 = vpop.f32.mrf.mxu0
  %v1792 = vadd.f32 %v1739, %v1791
  %1793 = vmatmul.f32.gmra.mxu0 %v1754
  %v1794 = vpop.f32.mrf.mxu0
  %v1795 = vadd.f32 %v1739, %v1794
  %1796 = vmatmul.f32.gmra.mxu0 %v1757
  %v1797 = vpop.f32.mrf.mxu0
  %v1798 = vadd.f32 %v1739, %v1797
  %1799 = vmatmul.f32.gmra.mxu0 %v1760
  %v1800 = vpop.f32.mrf.mxu0
  %v1801 = vadd.f32 %v1739, %v1800
  %1802 = vmatmul.f32.gmra.mxu0 %v1763
  %v1803 = vpop.f32.mrf.mxu0
  %v1804 = vadd.f32 %v1739, %v1803
  %1805 = vdwg.mxu0
  %1806 = vst [vmem:[%s17] sm:$0xff] %v1783
  %1807 = vst [vmem:[%s17 + $0x8] sm:$0xff] %v1786
  %1808 = vst [vmem:[%s17 + $0x10] sm:$0xff] %v1789
  %1809 = vst [vmem:[%s17 + $0x18] sm:$0xff] %v1792
  %1810 = vst [vmem:[%s17 + $0x20] sm:$0xff] %v1795
  %1811 = vst [vmem:[%s17 + $0x28] sm:$0xff] %v1798
  %1812 = vst [vmem:[%s17 + $0x30] sm:$0xff] %v1801
  %1813 = vst [vmem:[%s17 + $0x38] sm:$0xff] %v1804
  // Predicated region
  $region66: #{vae_forward.1} parent=0 // pred_check
    _
  $region67: #{vae_forward.1} parent=0 // pred_check_branch
    %1815 = sbr.rel (0) target = $region69
  $region68: #{vae_forward.1} parent=0 // pred_region
    _
  $region69: #{vae_forward.1} parent=0 // pred_fallthru
    _
  // Predicated region
  $region70: #{vae_forward.1} parent=0 // pred_check
    _
  $region71: #{vae_forward.1} parent=0 // pred_check_branch
    %1817 = sbr.rel (0) target = $region73
  $region72: #{vae_forward.1} parent=0 // pred_region
    _
  $region73: #{vae_forward.1} parent=0 // pred_fallthru
    _
  // Predicated region
  $region74: #{vae_forward.1} parent=0 // pred_check
    _
  $region75: #{vae_forward.1} parent=0 // pred_check_branch
    %1819 = sbr.rel (0) target = $region77
  $region76: #{vae_forward.1} parent=0 // pred_region
    _
  $region77: #{vae_forward.1} parent=0 // pred_fallthru
    _
  // Predicated region
  $region78: #{vae_forward.1} parent=0 // pred_check
    _
  $region79: #{vae_forward.1} parent=0 // pred_check_branch
    %1821 = sbr.rel (0) target = $region81
  $region80: #{vae_forward.1} parent=0 // pred_region
    _
  $region81: #{vae_forward.1} parent=0 // pred_fallthru
    _

</llo_original>
